<compile_context>
chip_gen: v6e
topology: v6e:2x2x1
jax: 0.10.0
libtpu: 0.0.40
codegen_flags: <defaults>
</compile_context>

<pallas_src>
import jax
import jax.numpy as jnp
from jax.experimental import pallas as pl
from jax.experimental.pallas import tpu as pltpu

IN_FEATURES = 4 * 4 * 50      # 800
HIDDEN = 500
HIDDEN_PAD = 512              # lane-friendly hidden width (500 -> 512)
NUM_CLASSES = 10
OUT_PAD = 128                 # lane-friendly class width (10 -> 128)


def _mlp_kernel(x_ref, w1_ref, b1_ref, w2_ref, b2_ref, o_ref):
    # h = relu(x @ W1 + b1): bf16 MXU inputs, f32 accumulation, f32 epilogue.
    x = x_ref[...]
    if x.dtype != jnp.bfloat16:           # static dtype check; no-op when the
        x = x.astype(jnp.bfloat16)        # producer already feeds bf16
    h = jnp.dot(x, w1_ref[...], preferred_element_type=jnp.float32)
    h = jnp.maximum(h + b1_ref[...], 0.0)
    # out = h @ W2 + b2
    out = jnp.dot(h.astype(jnp.bfloat16), w2_ref[...],
                  preferred_element_type=jnp.float32)
    o_ref[...] = (out + b2_ref[...]).astype(o_ref.dtype)


def prepare_params(w1, b1, w2, b2):
    """One-time parameter prep (hoisted out of the per-call path).

    Transposes torch (out, in) weights to (in, out), zero-pads hidden 500->512
    and classes C->128 (zeros keep the math identical), and casts weights to
    bf16 so the dominant W1 DMA moves half the bytes.
    """
    num_classes = w2.shape[0]
    w1t = jnp.zeros((IN_FEATURES, HIDDEN_PAD), jnp.bfloat16)
    w1t = w1t.at[:, :HIDDEN].set(jnp.transpose(w1).astype(jnp.bfloat16))
    b1r = jnp.zeros((1, HIDDEN_PAD), jnp.float32).at[:, :HIDDEN].set(b1)
    w2t = jnp.zeros((HIDDEN_PAD, OUT_PAD), jnp.bfloat16)
    w2t = w2t.at[:HIDDEN, :num_classes].set(
        jnp.transpose(w2).astype(jnp.bfloat16))
    b2r = jnp.zeros((1, OUT_PAD), jnp.float32).at[:, :num_classes].set(b2)
    return w1t, b1r, w2t, b2r, num_classes


def _batch_tile(b_rows):
    """Pick the batch tile.

    Big tiles amortize the ~0.35 us per-grid-step overhead (512-row tiles hit
    ~85% of HBM roofline vs ~29% at 128), while B > 512 always yields >= 2 grid
    steps so v7x's two TensorCores both run on the "parallel" axis.
    VMEM at tm=512 is ~3-4 MB double-buffered - fine on all generations.
    """
    b8 = -(-b_rows // 8) * 8              # round up to sublane multiple
    if b8 <= 512:
        return b8                         # tiny/medium batch: single grid step
    return 512


def net_forward(x_nchw, w1t, b1r, w2t, b2r, num_classes,
                out_dtype=jnp.bfloat16, slice_logits=True):
    """x_nchw: (B, 50, 4, 4), ideally already bf16 from the producer.

    Params come from prepare_params(). Returns (B, num_classes) logits (or the
    padded (b_pad, 128) slab when slice_logits=False, for consumers that can
    take it directly and skip the slice pass).
    """
    B = x_nchw.shape[0]
    # torch.flatten(x, 1): row-major over (C, H, W); reshape is metadata-only.
    x_flat = x_nchw.reshape(B, -1)                         # (B, 800)

    tm = _batch_tile(B)
    b_pad = ((B + tm - 1) // tm) * tm
    if b_pad != B:
        x_flat = jnp.pad(x_flat, ((0, b_pad - B), (0, 0)))
    grid = (b_pad // tm,)

    x_bytes = x_flat.size * x_flat.dtype.itemsize
    out_bytes = b_pad * OUT_PAD * jnp.dtype(out_dtype).itemsize
    cost = pl.CostEstimate(
        flops=2 * b_pad * (IN_FEATURES * HIDDEN_PAD + HIDDEN_PAD * OUT_PAD),
        transcendentals=0,
        bytes_accessed=(x_bytes + w1t.size * 2 + w2t.size * 2
                        + b1r.size * 4 + b2r.size * 4 + out_bytes),
    )

    grid_spec = pltpu.PrefetchScalarGridSpec(
        num_scalar_prefetch=0,
        grid=grid,
        in_specs=[
            pl.BlockSpec((tm, IN_FEATURES), lambda i: (i, 0)),
            pl.BlockSpec((IN_FEATURES, HIDDEN_PAD), lambda i: (0, 0)),
            pl.BlockSpec((1, HIDDEN_PAD), lambda i: (0, 0)),
            pl.BlockSpec((HIDDEN_PAD, OUT_PAD), lambda i: (0, 0)),
            pl.BlockSpec((1, OUT_PAD), lambda i: (0, 0)),
        ],
        out_specs=pl.BlockSpec((tm, OUT_PAD), lambda i: (i, 0)),
    )

    out_pad = pl.pallas_call(
        _mlp_kernel,
        out_shape=jax.ShapeDtypeStruct((b_pad, OUT_PAD), out_dtype),
        grid_spec=grid_spec,
        compiler_params=pltpu.CompilerParams(
            dimension_semantics=("parallel",)),
        cost_estimate=cost,
    )(x_flat, w1t, b1r, w2t, b2r)

    if slice_logits:
        return out_pad[:B, :num_classes]
    return out_pad


def init_params(key, num_classes=NUM_CLASSES):
    """Mirror Net._initialize_weights: Linear weight ~ N(0, 0.01), bias = 0."""
    k1, k2 = jax.random.split(key)
    w1 = 0.01 * jax.random.normal(k1, (HIDDEN, IN_FEATURES), dtype=jnp.float32)
    b1 = jnp.zeros((HIDDEN,), dtype=jnp.float32)
    w2 = 0.01 * jax.random.normal(k2, (num_classes, HIDDEN), dtype=jnp.float32)
    b2 = jnp.zeros((num_classes,), dtype=jnp.float32)
    return w1, b1, w2, b2


def _reference(x_f32, w1, b1, w2, b2):
    x_flat = x_f32.reshape(x_f32.shape[0], -1)
    return jnp.maximum(x_flat @ w1.T + b1, 0.0) @ w2.T + b2


if __name__ == "__main__":
    key = jax.random.PRNGKey(0)
    kx, kp, kx2 = jax.random.split(key, 3)

    w1, b1, w2, b2 = init_params(kp, NUM_CLASSES)
    # One-time parameter prep (transpose + pad + bf16), outside the hot path.
    w1t, b1r, w2t, b2r, num_classes = prepare_params(w1, b1, w2, b2)

    # --- tiny-batch latency path (B=2) ---------------------------------------
    B = 2
    # features(x) output / classifier input: (B, 50, 4, 4) NCHW.
    x_f32 = jax.random.normal(kx, (B, 50, 4, 4), dtype=jnp.float32)
    # The producer ("features") would emit bf16 directly; the cast here stands
    # in for that and is NOT inside net_forward's hot path.
    x_bf16 = x_f32.astype(jnp.bfloat16)

    out = net_forward(x_bf16, w1t, b1r, w2t, b2r, num_classes)
    out = jax.block_until_ready(out)

    ref = _reference(x_f32, w1, b1, w2, b2)
    assert out.shape == (B, NUM_CLASSES)
    assert jnp.allclose(out.astype(jnp.float32), ref, atol=2e-2, rtol=2e-2)

    # --- large-batch throughput path (2 grid steps of 512 rows) --------------
    B2 = 1024
    x2_f32 = jax.random.normal(kx2, (B2, 50, 4, 4), dtype=jnp.float32)
    x2_bf16 = x2_f32.astype(jnp.bfloat16)

    out2 = net_forward(x2_bf16, w1t, b1r, w2t, b2r, num_classes)
    out2 = jax.block_until_ready(out2)

    ref2 = _reference(x2_f32, w1, b1, w2, b2)
    assert out2.shape == (B2, NUM_CLASSES)
    assert jnp.allclose(out2.astype(jnp.float32), ref2, atol=2e-2, rtol=2e-2)

    print("KERNEL_OK")
</pallas_src>

<mosaic_0001>
module attributes {stable_mosaic.version = 11 : i64} {
  func.func @_mlp_kernel(%arg0: i32, %arg1: memref<8x800xbf16, #tpu.memory_space<vmem>>, %arg2: memref<800x512xbf16, #tpu.memory_space<vmem>>, %arg3: memref<1x512xf32, #tpu.memory_space<vmem>>, %arg4: memref<512x128xbf16, #tpu.memory_space<vmem>>, %arg5: memref<1x128xf32, #tpu.memory_space<vmem>>, %arg6: memref<8x128xbf16, #tpu.memory_space<vmem>>) attributes {dimension_semantics = [#tpu.dimension_semantics<parallel>], iteration_bounds = array<i64: 1>, scalar_prefetch = 0 : i64, scratch_operands = 0 : i64, tpu.core_type = #tpu.core_type<tc>, window_params = [{transform_indices = @transform_0, window_bounds = array<i64: 8, 800>}, {pipeline_mode = #tpu.pipeline_mode<synchronous>, transform_indices = @transform_1, window_bounds = array<i64: 800, 512>}, {pipeline_mode = #tpu.pipeline_mode<synchronous>, transform_indices = @transform_2, window_bounds = array<i64: 1, 512>}, {pipeline_mode = #tpu.pipeline_mode<synchronous>, transform_indices = @transform_3, window_bounds = array<i64: 512, 128>}, {pipeline_mode = #tpu.pipeline_mode<synchronous>, transform_indices = @transform_4, window_bounds = array<i64: 1, 128>}, {transform_indices = @transform_5, window_bounds = array<i64: 8, 128>}]} {
    %c0 = arith.constant 0 : index
    %c0_0 = arith.constant 0 : index
    %0 = vector.load %arg1[%c0, %c0_0] : memref<8x800xbf16, #tpu.memory_space<vmem>>, vector<8x800xbf16>
    %c0_1 = arith.constant 0 : index
    %c0_2 = arith.constant 0 : index
    %1 = vector.load %arg2[%c0_1, %c0_2] : memref<800x512xbf16, #tpu.memory_space<vmem>>, vector<800x512xbf16>
    %cst = arith.constant dense<0.000000e+00> : vector<8x512xf32>
    %2 = tpu.matmul %0, %1, %cst {dimension_numbers = #tpu.dot_dimension_numbers<[1], [0], [0], [1], [0, 0, 1, 1], [], []>} : vector<8x800xbf16>, vector<800x512xbf16>, vector<8x512xf32> -> vector<8x512xf32>
    %c0_3 = arith.constant 0 : index
    %c0_4 = arith.constant 0 : index
    %3 = vector.load %arg3[%c0_3, %c0_4] : memref<1x512xf32, #tpu.memory_space<vmem>>, vector<1x512xf32>
    %4 = vector.broadcast %3 : vector<1x512xf32> to vector<8x512xf32>
    %5 = arith.addf %2, %4 : vector<8x512xf32>
    %cst_5 = arith.constant 0.000000e+00 : f32
    %6 = vector.broadcast %cst_5 : f32 to vector<8x512xf32>
    %7 = arith.maximumf %5, %6 : vector<8x512xf32>
    %8 = arith.truncf %7 : vector<8x512xf32> to vector<8x512xbf16>
    %c0_6 = arith.constant 0 : index
    %c0_7 = arith.constant 0 : index
    %9 = vector.load %arg4[%c0_6, %c0_7] : memref<512x128xbf16, #tpu.memory_space<vmem>>, vector<512x128xbf16>
    %cst_8 = arith.constant dense<0.000000e+00> : vector<8x128xf32>
    %10 = tpu.matmul %8, %9, %cst_8 {dimension_numbers = #tpu.dot_dimension_numbers<[1], [0], [0], [1], [0, 0, 1, 1], [], []>} : vector<8x512xbf16>, vector<512x128xbf16>, vector<8x128xf32> -> vector<8x128xf32>
    %c0_9 = arith.constant 0 : index
    %c0_10 = arith.constant 0 : index
    %11 = vector.load %arg5[%c0_9, %c0_10] : memref<1x128xf32, #tpu.memory_space<vmem>>, vector<1x128xf32>
    %12 = vector.broadcast %11 : vector<1x128xf32> to vector<8x128xf32>
    %13 = arith.addf %10, %12 : vector<8x128xf32>
    %14 = arith.truncf %13 : vector<8x128xf32> to vector<8x128xbf16>
    %c0_11 = arith.constant 0 : index
    %c0_12 = arith.constant 0 : index
    %15 = vector.load %arg6[%c0_11, %c0_12] : memref<8x128xbf16, #tpu.memory_space<vmem>>, vector<8x128xbf16>
    tpu.vector_store %arg6[%c0_11, %c0_12], %14 {strides = array<i32>} : memref<8x128xbf16, #tpu.memory_space<vmem>>, vector<8x128xbf16>,
    return
  }
  func.func @transform_0(%arg0: i32) -> (i32, i32) {
    %c0_i32 = arith.constant 0 : i32
    %c0_i32_0 = arith.constant 0 : i32
    return %arg0, %c0_i32 : i32, i32
  }
  func.func @transform_1(%arg0: i32) -> (i32, i32) {
    %c0_i32 = arith.constant 0 : i32
    %c0_i32_0 = arith.constant 0 : i32
    %c0_i32_1 = arith.constant 0 : i32
    return %c0_i32, %c0_i32_0 : i32, i32
  }
  func.func @transform_2(%arg0: i32) -> (i32, i32) {
    %c0_i32 = arith.constant 0 : i32
    %c0_i32_0 = arith.constant 0 : i32
    %c0_i32_1 = arith.constant 0 : i32
    return %c0_i32, %c0_i32_0 : i32, i32
  }
  func.func @transform_3(%arg0: i32) -> (i32, i32) {
    %c0_i32 = arith.constant 0 : i32
    %c0_i32_0 = arith.constant 0 : i32
    %c0_i32_1 = arith.constant 0 : i32
    return %c0_i32, %c0_i32_0 : i32, i32
  }
  func.func @transform_4(%arg0: i32) -> (i32, i32) {
    %c0_i32 = arith.constant 0 : i32
    %c0_i32_0 = arith.constant 0 : i32
    %c0_i32_1 = arith.constant 0 : i32
    return %c0_i32, %c0_i32_0 : i32, i32
  }
  func.func @transform_5(%arg0: i32) -> (i32, i32) {
    %c0_i32 = arith.constant 0 : i32
    %c0_i32_0 = arith.constant 0 : i32
    return %arg0, %c0_i32 : i32, i32
  }
}

</mosaic_0001>

<llo_original>
// kernel: tpu_custom_call.1
$region0: #{tpu_custom_call.1}
  #allocation0 [shape = 'u32[]', space=smem, size = 0x4, offset = 0x4, fixed_abs, tag = 'smem constant byte address 0x4 - core index']
  #allocation1 [shape = 'u32[144,128]{1,0:T(1,128)}', space=vmem, size = 0x12000, scoped, tag = 'internal scratch']
  %s0 = inlined_call_operand.hbm [shape: bf16[8,800], index: 0, kind: input, shape index: {}]
  %s1 = inlined_call_operand.hbm [shape: bf16[800,512], index: 1, kind: input, shape index: {}]
  %s2 = inlined_call_operand.hbm [shape: f32[1,512], index: 2, kind: input, shape index: {}]
  %s3 = inlined_call_operand.hbm [shape: bf16[512,128], index: 3, kind: input, shape index: {}]
  %s4 = inlined_call_operand.vmem [shape: f32[1,128], index: 4, kind: input, shape index: {}]
  %s5 = inlined_call_operand.hbm [shape: bf16[8,128], index: 5, kind: output, shape index: {}]
  %s6 = sld [smem:[#allocation0]]
  $region46: #{tpu_custom_call.1} parent=0
    _
  %s8 = ssub.s32 1, %s6
  %s9 = scalar_select 0, %s8, %s6
  $region1: #{tpu_custom_call.1} parent=0
    #allocation2 [shape = 'u8[14336]{0}', space=vmem, size = 0x3800, scoped, tag = 'input window, operand 0, single buffered']
    #allocation3 [shape = 's32[1]{0}', space=sflag, size = 0x4, scoped, tag = 'scoped memory for tpu_custom_call.1']
    #allocation4 [shape = 's32[1]{0}', space=sflag, size = 0x4, scoped, tag = 'scoped memory for tpu_custom_call.1']
    #allocation5 [shape = 'u8[819200]{0}', space=vmem, size = 0xc8000, scoped, tag = 'input window, operand 1, single buffered']
    #allocation6 [shape = 's32[1]{0}', space=sflag, size = 0x4, scoped, tag = 'scoped memory for tpu_custom_call.1']
    #allocation7 [shape = 'u8[2048]{0}', space=vmem, size = 0x800, scoped, tag = 'input window, operand 2, single buffered']
    #allocation8 [shape = 'u8[131072]{0}', space=vmem, size = 0x20000, scoped, tag = 'input window, operand 3, single buffered']
    #allocation9 [shape = 's32[1]{0}', space=sflag, size = 0x4, scoped, tag = 'scoped memory for tpu_custom_call.1']
    #allocation10 [shape = 'u8[2048]{0}', space=vmem, size = 0x800, scoped, tag = 'output window, operand 0, single buffered']
    %10 = vsyncpa [#allocation3], 0
    %11 = vsyncpa [#allocation6], 0
    %12 = vsyncpa [#allocation9], 0
    %13 = vsyncpa [#allocation4], 0
    // Predicated region
    $region2: #{tpu_custom_call.1} parent=1 // pred_check
      _
    $region3: #{tpu_custom_call.1} parent=1 // pred_check_branch
      %15 = sbr.rel (0) target = $region5
    $region4: #{tpu_custom_call.1} parent=1 // pred_region
      %s17 = ssub.s32 448, 448
      %18 = vsyncadd [#allocation3], %s17
      %s20 = sshll.u32 [#allocation2], 4
      %s21 = int_to_ptr.vmem [resolvable:$true] %s20
      %23 = dma.hbm_to_vmem [thread:$0]  %s0, 448, %s21, [#allocation3]
    $region5: #{tpu_custom_call.1} parent=1 // pred_fallthru
      _
    // Predicated region
    $region6: #{tpu_custom_call.1} parent=1 // pred_check
      _
    $region7: #{tpu_custom_call.1} parent=1 // pred_check_branch
      %25 = sbr.rel (0) target = $region9
    $region8: #{tpu_custom_call.1} parent=1 // pred_region
      %s27 = ssub.s32 25600, 25600
      %28 = vsyncadd [#allocation6], %s27
      %s29 = sshll.u32 [#allocation5], 4
      %s30 = int_to_ptr.vmem [resolvable:$true] %s29
      %35 = dma.hbm_to_vmem [thread:$0]  %s1, 25600, %s30, [#allocation6], 256, 256, 16
    $region9: #{tpu_custom_call.1} parent=1 // pred_fallthru
      _
    // Predicated region
    $region10: #{tpu_custom_call.1} parent=1 // pred_check
      _
    $region11: #{tpu_custom_call.1} parent=1 // pred_check_branch
      %37 = sbr.rel (0) target = $region13
    $region12: #{tpu_custom_call.1} parent=1 // pred_region
      %s39 = ssub.s32 64, 64
      %40 = vsyncadd [#allocation6], %s39
      %s42 = sshll.u32 [#allocation7], 4
      %s43 = int_to_ptr.vmem [resolvable:$true] %s42
      %45 = dma.hbm_to_vmem [thread:$0]  %s2, 64, %s43, [#allocation6]
    $region13: #{tpu_custom_call.1} parent=1 // pred_fallthru
      _
    // Predicated region
    $region14: #{tpu_custom_call.1} parent=1 // pred_check
      _
    $region15: #{tpu_custom_call.1} parent=1 // pred_check_branch
      %47 = sbr.rel (0) target = $region17
    $region16: #{tpu_custom_call.1} parent=1 // pred_region
      %s49 = ssub.s32 4096, 4096
      %50 = vsyncadd [#allocation9], %s49
      %s51 = sshll.u32 [#allocation8], 4
      %s52 = int_to_ptr.vmem [resolvable:$true] %s51
      %57 = dma.hbm_to_vmem [thread:$0]  %s3, 4096, %s52, [#allocation9], 64, 64, 4
    $region17: #{tpu_custom_call.1} parent=1 // pred_fallthru
      _
    // Predicated region
    $region18: #{tpu_custom_call.1} parent=1 // pred_check
      _
    $region19: #{tpu_custom_call.1} parent=1 // pred_check_branch
      %59 = sbr.rel (0) target = $region21
    $region20: #{tpu_custom_call.1} parent=1 // pred_region
      _
    $region21: #{tpu_custom_call.1} parent=1 // pred_fallthru
      _
    // Predicated region
    $region22: #{tpu_custom_call.1} parent=1 // pred_check
      _
    $region23: #{tpu_custom_call.1} parent=1 // pred_check_branch
      %61 = sbr.rel (0) target = $region25
    $region24: #{tpu_custom_call.1} parent=1 // pred_region
      %62 = dma.done [#allocation3], 448
    $region25: #{tpu_custom_call.1} parent=1 // pred_fallthru
      _
    // Predicated region
    $region26: #{tpu_custom_call.1} parent=1 // pred_check
      _
    $region27: #{tpu_custom_call.1} parent=1 // pred_check_branch
      %64 = sbr.rel (0) target = $region29
    $region28: #{tpu_custom_call.1} parent=1 // pred_region
      %65 = dma.done [#allocation6], 25600
    $region29: #{tpu_custom_call.1} parent=1 // pred_fallthru
      _
    // Predicated region
    $region30: #{tpu_custom_call.1} parent=1 // pred_check
      _
    $region31: #{tpu_custom_call.1} parent=1 // pred_check_branch
      %67 = sbr.rel (0) target = $region33
    $region32: #{tpu_custom_call.1} parent=1 // pred_region
      %68 = dma.done [#allocation6], 64
    $region33: #{tpu_custom_call.1} parent=1 // pred_fallthru
      _
    // Predicated region
    $region34: #{tpu_custom_call.1} parent=1 // pred_check
      _
    $region35: #{tpu_custom_call.1} parent=1 // pred_check_branch
      %70 = sbr.rel (0) target = $region37
    $region36: #{tpu_custom_call.1} parent=1 // pred_region
      %71 = dma.done [#allocation9], 4096
    $region37: #{tpu_custom_call.1} parent=1 // pred_fallthru
      _
    %v73 = vld [vmem:[#allocation2] sm:$0xff]
    %v74 = vld [vmem:[#allocation2 + $0x8] sm:$0xff]
    %v75 = vld [vmem:[#allocation2 + $0x10] sm:$0xff]
    %v76 = vld [vmem:[#allocation2 + $0x18] sm:$0xf]
    %v77 = vld [vmem:[#allocation5] sm:$0xff]
    %v78 = vld [vmem:[#allocation5 + $0x8] sm:$0xff]
    %v79 = vld [vmem:[#allocation5 + $0x10] sm:$0xff]
    %v80 = vld [vmem:[#allocation5 + $0x18] sm:$0xff]
    %v81 = vld [vmem:[#allocation5 + $0x20] sm:$0xff]
    %v82 = vld [vmem:[#allocation5 + $0x28] sm:$0xff]
    %v83 = vld [vmem:[#allocation5 + $0x30] sm:$0xff]
    %v84 = vld [vmem:[#allocation5 + $0x38] sm:$0xff]
    %v85 = vld [vmem:[#allocation5 + $0x40] sm:$0xff]
    %v86 = vld [vmem:[#allocation5 + $0x48] sm:$0xff]
    %v87 = vld [vmem:[#allocation5 + $0x50] sm:$0xff]
    %v88 = vld [vmem:[#allocation5 + $0x58] sm:$0xff]
    %v89 = vld [vmem:[#allocation5 + $0x60] sm:$0xff]
    %v90 = vld [vmem:[#allocation5 + $0x68] sm:$0xff]
    %v91 = vld [vmem:[#allocation5 + $0x70] sm:$0xff]
    %v92 = vld [vmem:[#allocation5 + $0x78] sm:$0xff]
    %v93 = vld [vmem:[#allocation5 + $0x80] sm:$0xff]
    %v94 = vld [vmem:[#allocation5 + $0x88] sm:$0xff]
    %v95 = vld [vmem:[#allocation5 + $0x90] sm:$0xff]
    %v96 = vld [vmem:[#allocation5 + $0x98] sm:$0xff]
    %v97 = vld [vmem:[#allocation5 + $0xa0] sm:$0xff]
    %v98 = vld [vmem:[#allocation5 + $0xa8] sm:$0xff]
    %v99 = vld [vmem:[#allocation5 + $0xb0] sm:$0xff]
    %v100 = vld [vmem:[#allocation5 + $0xb8] sm:$0xff]
    %v101 = vld [vmem:[#allocation5 + $0xc0] sm:$0xff]
    %v102 = vld [vmem:[#allocation5 + $0xc8] sm:$0xff]
    %v103 = vld [vmem:[#allocation5 + $0xd0] sm:$0xff]
    %v104 = vld [vmem:[#allocation5 + $0xd8] sm:$0xff]
    %v105 = vld [vmem:[#allocation5 + $0xe0] sm:$0xff]
    %v106 = vld [vmem:[#allocation5 + $0xe8] sm:$0xff]
    %v107 = vld [vmem:[#allocation5 + $0xf0] sm:$0xff]
    %v108 = vld [vmem:[#allocation5 + $0xf8] sm:$0xff]
    %v109 = vld [vmem:[#allocation5 + $0x100] sm:$0xff]
    %v110 = vld [vmem:[#allocation5 + $0x108] sm:$0xff]
    %v111 = vld [vmem:[#allocation5 + $0x110] sm:$0xff]
    %v112 = vld [vmem:[#allocation5 + $0x118] sm:$0xff]
    %v113 = vld [vmem:[#allocation5 + $0x120] sm:$0xff]
    %v114 = vld [vmem:[#allocation5 + $0x128] sm:$0xff]
    %v115 = vld [vmem:[#allocation5 + $0x130] sm:$0xff]
    %v116 = vld [vmem:[#allocation5 + $0x138] sm:$0xff]
    %v117 = vld [vmem:[#allocation5 + $0x140] sm:$0xff]
    %v118 = vld [vmem:[#allocation5 + $0x148] sm:$0xff]
    %v119 = vld [vmem:[#allocation5 + $0x150] sm:$0xff]
    %v120 = vld [vmem:[#allocation5 + $0x158] sm:$0xff]
    %v121 = vld [vmem:[#allocation5 + $0x160] sm:$0xff]
    %v122 = vld [vmem:[#allocation5 + $0x168] sm:$0xff]
    %v123 = vld [vmem:[#allocation5 + $0x170] sm:$0xff]
    %v124 = vld [vmem:[#allocation5 + $0x178] sm:$0xff]
    %v125 = vld [vmem:[#allocation5 + $0x180] sm:$0xff]
    %v126 = vld [vmem:[#allocation5 + $0x188] sm:$0xff]
    %v127 = vld [vmem:[#allocation5 + $0x190] sm:$0xff]
    %v128 = vld [vmem:[#allocation5 + $0x198] sm:$0xff]
    %v129 = vld [vmem:[#allocation5 + $0x1a0] sm:$0xff]
    %v130 = vld [vmem:[#allocation5 + $0x1a8] sm:$0xff]
    %v131 = vld [vmem:[#allocation5 + $0x1b0] sm:$0xff]
    %v132 = vld [vmem:[#allocation5 + $0x1b8] sm:$0xff]
    %v133 = vld [vmem:[#allocation5 + $0x1c0] sm:$0xff]
    %v134 = vld [vmem:[#allocation5 + $0x1c8] sm:$0xff]
    %v135 = vld [vmem:[#allocation5 + $0x1d0] sm:$0xff]
    %v136 = vld [vmem:[#allocation5 + $0x1d8] sm:$0xff]
    %v137 = vld [vmem:[#allocation5 + $0x1e0] sm:$0xff]
    %v138 = vld [vmem:[#allocation5 + $0x1e8] sm:$0xff]
    %v139 = vld [vmem:[#allocation5 + $0x1f0] sm:$0xff]
    %v140 = vld [vmem:[#allocation5 + $0x1f8] sm:$0xff]
    %v141 = vld [vmem:[#allocation5 + $0x200] sm:$0xff]
    %v142 = vld [vmem:[#allocation5 + $0x208] sm:$0xff]
    %v143 = vld [vmem:[#allocation5 + $0x210] sm:$0xff]
    %v144 = vld [vmem:[#allocation5 + $0x218] sm:$0xff]
    %v145 = vld [vmem:[#allocation5 + $0x220] sm:$0xff]
    %v146 = vld [vmem:[#allocation5 + $0x228] sm:$0xff]
    %v147 = vld [vmem:[#allocation5 + $0x230] sm:$0xff]
    %v148 = vld [vmem:[#allocation5 + $0x238] sm:$0xff]
    %v149 = vld [vmem:[#allocation5 + $0x240] sm:$0xff]
    %v150 = vld [vmem:[#allocation5 + $0x248] sm:$0xff]
    %v151 = vld [vmem:[#allocation5 + $0x250] sm:$0xff]
    %v152 = vld [vmem:[#allocation5 + $0x258] sm:$0xff]
    %v153 = vld [vmem:[#allocation5 + $0x260] sm:$0xff]
    %v154 = vld [vmem:[#allocation5 + $0x268] sm:$0xff]
    %v155 = vld [vmem:[#allocation5 + $0x270] sm:$0xff]
    %v156 = vld [vmem:[#allocation5 + $0x278] sm:$0xff]
    %v157 = vld [vmem:[#allocation5 + $0x280] sm:$0xff]
    %v158 = vld [vmem:[#allocation5 + $0x288] sm:$0xff]
    %v159 = vld [vmem:[#allocation5 + $0x290] sm:$0xff]
    %v160 = vld [vmem:[#allocation5 + $0x298] sm:$0xff]
    %v161 = vld [vmem:[#allocation5 + $0x2a0] sm:$0xff]
    %v162 = vld [vmem:[#allocation5 + $0x2a8] sm:$0xff]
    %v163 = vld [vmem:[#allocation5 + $0x2b0] sm:$0xff]
    %v164 = vld [vmem:[#allocation5 + $0x2b8] sm:$0xff]
    %v165 = vld [vmem:[#allocation5 + $0x2c0] sm:$0xff]
    %v166 = vld [vmem:[#allocation5 + $0x2c8] sm:$0xff]
    %v167 = vld [vmem:[#allocation5 + $0x2d0] sm:$0xff]
    %v168 = vld [vmem:[#allocation5 + $0x2d8] sm:$0xff]
    %v169 = vld [vmem:[#allocation5 + $0x2e0] sm:$0xff]
    %v170 = vld [vmem:[#allocation5 + $0x2e8] sm:$0xff]
    %v171 = vld [vmem:[#allocation5 + $0x2f0] sm:$0xff]
    %v172 = vld [vmem:[#allocation5 + $0x2f8] sm:$0xff]
    %v173 = vld [vmem:[#allocation5 + $0x300] sm:$0xff]
    %v174 = vld [vmem:[#allocation5 + $0x308] sm:$0xff]
    %v175 = vld [vmem:[#allocation5 + $0x310] sm:$0xff]
    %v176 = vld [vmem:[#allocation5 + $0x318] sm:$0xff]
    %v177 = vld [vmem:[#allocation5 + $0x320] sm:$0xff]
    %v178 = vld [vmem:[#allocation5 + $0x328] sm:$0xff]
    %v179 = vld [vmem:[#allocation5 + $0x330] sm:$0xff]
    %v180 = vld [vmem:[#allocation5 + $0x338] sm:$0xff]
    %v181 = vld [vmem:[#allocation5 + $0x340] sm:$0xff]
    %v182 = vld [vmem:[#allocation5 + $0x348] sm:$0xff]
    %v183 = vld [vmem:[#allocation5 + $0x350] sm:$0xff]
    %v184 = vld [vmem:[#allocation5 + $0x358] sm:$0xff]
    %v185 = vld [vmem:[#allocation5 + $0x360] sm:$0xff]
    %v186 = vld [vmem:[#allocation5 + $0x368] sm:$0xff]
    %v187 = vld [vmem:[#allocation5 + $0x370] sm:$0xff]
    %v188 = vld [vmem:[#allocation5 + $0x378] sm:$0xff]
    %v189 = vld [vmem:[#allocation5 + $0x380] sm:$0xff]
    %v190 = vld [vmem:[#allocation5 + $0x388] sm:$0xff]
    %v191 = vld [vmem:[#allocation5 + $0x390] sm:$0xff]
    %v192 = vld [vmem:[#allocation5 + $0x398] sm:$0xff]
    %v193 = vld [vmem:[#allocation5 + $0x3a0] sm:$0xff]
    %v194 = vld [vmem:[#allocation5 + $0x3a8] sm:$0xff]
    %v195 = vld [vmem:[#allocation5 + $0x3b0] sm:$0xff]
    %v196 = vld [vmem:[#allocation5 + $0x3b8] sm:$0xff]
    %v197 = vld [vmem:[#allocation5 + $0x3c0] sm:$0xff]
    %v198 = vld [vmem:[#allocation5 + $0x3c8] sm:$0xff]
    %v199 = vld [vmem:[#allocation5 + $0x3d0] sm:$0xff]
    %v200 = vld [vmem:[#allocation5 + $0x3d8] sm:$0xff]
    %v201 = vld [vmem:[#allocation5 + $0x3e0] sm:$0xff]
    %v202 = vld [vmem:[#allocation5 + $0x3e8] sm:$0xff]
    %v203 = vld [vmem:[#allocation5 + $0x3f0] sm:$0xff]
    %v204 = vld [vmem:[#allocation5 + $0x3f8] sm:$0xff]
    %v205 = vld [vmem:[#allocation5 + $0x400] sm:$0xff]
    %v206 = vld [vmem:[#allocation5 + $0x408] sm:$0xff]
    %v207 = vld [vmem:[#allocation5 + $0x410] sm:$0xff]
    %v208 = vld [vmem:[#allocation5 + $0x418] sm:$0xff]
    %v209 = vld [vmem:[#allocation5 + $0x420] sm:$0xff]
    %v210 = vld [vmem:[#allocation5 + $0x428] sm:$0xff]
    %v211 = vld [vmem:[#allocation5 + $0x430] sm:$0xff]
    %v212 = vld [vmem:[#allocation5 + $0x438] sm:$0xff]
    %v213 = vld [vmem:[#allocation5 + $0x440] sm:$0xff]
    %v214 = vld [vmem:[#allocation5 + $0x448] sm:$0xff]
    %v215 = vld [vmem:[#allocation5 + $0x450] sm:$0xff]
    %v216 = vld [vmem:[#allocation5 + $0x458] sm:$0xff]
    %v217 = vld [vmem:[#allocation5 + $0x460] sm:$0xff]
    %v218 = vld [vmem:[#allocation5 + $0x468] sm:$0xff]
    %v219 = vld [vmem:[#allocation5 + $0x470] sm:$0xff]
    %v220 = vld [vmem:[#allocation5 + $0x478] sm:$0xff]
    %v221 = vld [vmem:[#allocation5 + $0x480] sm:$0xff]
    %v222 = vld [vmem:[#allocation5 + $0x488] sm:$0xff]
    %v223 = vld [vmem:[#allocation5 + $0x490] sm:$0xff]
    %v224 = vld [vmem:[#allocation5 + $0x498] sm:$0xff]
    %v225 = vld [vmem:[#allocation5 + $0x4a0] sm:$0xff]
    %v226 = vld [vmem:[#allocation5 + $0x4a8] sm:$0xff]
    %v227 = vld [vmem:[#allocation5 + $0x4b0] sm:$0xff]
    %v228 = vld [vmem:[#allocation5 + $0x4b8] sm:$0xff]
    %v229 = vld [vmem:[#allocation5 + $0x4c0] sm:$0xff]
    %v230 = vld [vmem:[#allocation5 + $0x4c8] sm:$0xff]
    %v231 = vld [vmem:[#allocation5 + $0x4d0] sm:$0xff]
    %v232 = vld [vmem:[#allocation5 + $0x4d8] sm:$0xff]
    %v233 = vld [vmem:[#allocation5 + $0x4e0] sm:$0xff]
    %v234 = vld [vmem:[#allocation5 + $0x4e8] sm:$0xff]
    %v235 = vld [vmem:[#allocation5 + $0x4f0] sm:$0xff]
    %v236 = vld [vmem:[#allocation5 + $0x4f8] sm:$0xff]
    %v237 = vld [vmem:[#allocation5 + $0x500] sm:$0xff]
    %v238 = vld [vmem:[#allocation5 + $0x508] sm:$0xff]
    %v239 = vld [vmem:[#allocation5 + $0x510] sm:$0xff]
    %v240 = vld [vmem:[#allocation5 + $0x518] sm:$0xff]
    %v241 = vld [vmem:[#allocation5 + $0x520] sm:$0xff]
    %v242 = vld [vmem:[#allocation5 + $0x528] sm:$0xff]
    %v243 = vld [vmem:[#allocation5 + $0x530] sm:$0xff]
    %v244 = vld [vmem:[#allocation5 + $0x538] sm:$0xff]
    %v245 = vld [vmem:[#allocation5 + $0x540] sm:$0xff]
    %v246 = vld [vmem:[#allocation5 + $0x548] sm:$0xff]
    %v247 = vld [vmem:[#allocation5 + $0x550] sm:$0xff]
    %v248 = vld [vmem:[#allocation5 + $0x558] sm:$0xff]
    %v249 = vld [vmem:[#allocation5 + $0x560] sm:$0xff]
    %v250 = vld [vmem:[#allocation5 + $0x568] sm:$0xff]
    %v251 = vld [vmem:[#allocation5 + $0x570] sm:$0xff]
    %v252 = vld [vmem:[#allocation5 + $0x578] sm:$0xff]
    %v253 = vld [vmem:[#allocation5 + $0x580] sm:$0xff]
    %v254 = vld [vmem:[#allocation5 + $0x588] sm:$0xff]
    %v255 = vld [vmem:[#allocation5 + $0x590] sm:$0xff]
    %v256 = vld [vmem:[#allocation5 + $0x598] sm:$0xff]
    %v257 = vld [vmem:[#allocation5 + $0x5a0] sm:$0xff]
    %v258 = vld [vmem:[#allocation5 + $0x5a8] sm:$0xff]
    %v259 = vld [vmem:[#allocation5 + $0x5b0] sm:$0xff]
    %v260 = vld [vmem:[#allocation5 + $0x5b8] sm:$0xff]
    %v261 = vld [vmem:[#allocation5 + $0x5c0] sm:$0xff]
    %v262 = vld [vmem:[#allocation5 + $0x5c8] sm:$0xff]
    %v263 = vld [vmem:[#allocation5 + $0x5d0] sm:$0xff]
    %v264 = vld [vmem:[#allocation5 + $0x5d8] sm:$0xff]
    %v265 = vld [vmem:[#allocation5 + $0x5e0] sm:$0xff]
    %v266 = vld [vmem:[#allocation5 + $0x5e8] sm:$0xff]
    %v267 = vld [vmem:[#allocation5 + $0x5f0] sm:$0xff]
    %v268 = vld [vmem:[#allocation5 + $0x5f8] sm:$0xff]
    %v269 = vld [vmem:[#allocation5 + $0x600] sm:$0xff]
    %v270 = vld [vmem:[#allocation5 + $0x608] sm:$0xff]
    %v271 = vld [vmem:[#allocation5 + $0x610] sm:$0xff]
    %v272 = vld [vmem:[#allocation5 + $0x618] sm:$0xff]
    %v273 = vld [vmem:[#allocation5 + $0x620] sm:$0xff]
    %v274 = vld [vmem:[#allocation5 + $0x628] sm:$0xff]
    %v275 = vld [vmem:[#allocation5 + $0x630] sm:$0xff]
    %v276 = vld [vmem:[#allocation5 + $0x638] sm:$0xff]
    %v277 = vld [vmem:[#allocation7] sm:$0xf]
    %v279 = vlaneseq
    %v280 = vshrl.u32 %v279, 7
    %v281 = vsub.s32 0, %v280
    %v282 = vrot.slane %v277, %v281
    %v283 = vlaneseq
    %v284 = vshrl.u32 %v283, 7
    %v285 = vsub.s32 1, %v284
    %v286 = vrot.slane %v277, %v285
    %v287 = vlaneseq
    %v288 = vshrl.u32 %v287, 7
    %v289 = vsub.s32 2, %v288
    %v290 = vrot.slane %v277, %v289
    %v291 = vlaneseq
    %v292 = vshrl.u32 %v291, 7
    %v293 = vsub.s32 3, %v292
    %v294 = vrot.slane %v277, %v293
    %v303 = vunpack.c.l.b16 %v73
    %v304 = vunpack.c.h.b16 %v73
    %v305 = vunpack.c.l.b16 %v74
    %v306 = vunpack.c.h.b16 %v74
    %v307 = vunpack.c.l.b16 %v75
    %v308 = vunpack.c.h.b16 %v75
    %v309 = vunpack.c.l.b16 %v76
    %v310 = vpack.c.b16 %v303, %v303
    %v311 = vpack.c.b16 %v304, %v304
    %v312 = vpack.c.b16 %v305, %v305
    %v313 = vpack.c.b16 %v306, %v306
    %v314 = vpack.c.b16 %v307, %v307
    %v315 = vpack.c.b16 %v308, %v308
    %v316 = vpack.c.b16 %v309, %v309
    %v523 = vunpack.c.l.b16 %v77
    %v524 = vunpack.c.h.b16 %v77
    %v525 = vunpack.c.l.b16 %v78
    %v526 = vunpack.c.h.b16 %v78
    %v527 = vunpack.c.l.b16 %v79
    %v528 = vunpack.c.h.b16 %v79
    %v529 = vunpack.c.l.b16 %v80
    %v530 = vunpack.c.h.b16 %v80
    %v531 = vunpack.c.l.b16 %v81
    %v532 = vunpack.c.h.b16 %v81
    %v533 = vunpack.c.l.b16 %v82
    %v534 = vunpack.c.h.b16 %v82
    %v535 = vunpack.c.l.b16 %v83
    %v536 = vunpack.c.h.b16 %v83
    %v537 = vunpack.c.l.b16 %v84
    %v538 = vunpack.c.h.b16 %v84
    %v539 = vunpack.c.l.b16 %v85
    %v540 = vunpack.c.h.b16 %v85
    %v541 = vunpack.c.l.b16 %v86
    %v542 = vunpack.c.h.b16 %v86
    %v543 = vunpack.c.l.b16 %v87
    %v544 = vunpack.c.h.b16 %v87
    %v545 = vunpack.c.l.b16 %v88
    %v546 = vunpack.c.h.b16 %v88
    %v547 = vunpack.c.l.b16 %v89
    %v548 = vunpack.c.h.b16 %v89
    %v549 = vunpack.c.l.b16 %v90
    %v550 = vunpack.c.h.b16 %v90
    %v551 = vunpack.c.l.b16 %v91
    %v552 = vunpack.c.h.b16 %v91
    %v553 = vunpack.c.l.b16 %v92
    %v554 = vunpack.c.h.b16 %v92
    %v555 = vunpack.c.l.b16 %v93
    %v556 = vunpack.c.h.b16 %v93
    %v557 = vunpack.c.l.b16 %v94
    %v558 = vunpack.c.h.b16 %v94
    %v559 = vunpack.c.l.b16 %v95
    %v560 = vunpack.c.h.b16 %v95
    %v561 = vunpack.c.l.b16 %v96
    %v562 = vunpack.c.h.b16 %v96
    %v563 = vunpack.c.l.b16 %v97
    %v564 = vunpack.c.h.b16 %v97
    %v565 = vunpack.c.l.b16 %v98
    %v566 = vunpack.c.h.b16 %v98
    %v567 = vunpack.c.l.b16 %v99
    %v568 = vunpack.c.h.b16 %v99
    %v569 = vunpack.c.l.b16 %v100
    %v570 = vunpack.c.h.b16 %v100
    %v571 = vunpack.c.l.b16 %v101
    %v572 = vunpack.c.h.b16 %v101
    %v573 = vunpack.c.l.b16 %v102
    %v574 = vunpack.c.h.b16 %v102
    %v575 = vunpack.c.l.b16 %v103
    %v576 = vunpack.c.h.b16 %v103
    %v577 = vunpack.c.l.b16 %v104
    %v578 = vunpack.c.h.b16 %v104
    %v579 = vunpack.c.l.b16 %v105
    %v580 = vunpack.c.h.b16 %v105
    %v581 = vunpack.c.l.b16 %v106
    %v582 = vunpack.c.h.b16 %v106
    %v583 = vunpack.c.l.b16 %v107
    %v584 = vunpack.c.h.b16 %v107
    %v585 = vunpack.c.l.b16 %v108
    %v586 = vunpack.c.h.b16 %v108
    %v587 = vunpack.c.l.b16 %v109
    %v588 = vunpack.c.h.b16 %v109
    %v589 = vunpack.c.l.b16 %v110
    %v590 = vunpack.c.h.b16 %v110
    %v591 = vunpack.c.l.b16 %v111
    %v592 = vunpack.c.h.b16 %v111
    %v593 = vunpack.c.l.b16 %v112
    %v594 = vunpack.c.h.b16 %v112
    %v595 = vunpack.c.l.b16 %v113
    %v596 = vunpack.c.h.b16 %v113
    %v597 = vunpack.c.l.b16 %v114
    %v598 = vunpack.c.h.b16 %v114
    %v599 = vunpack.c.l.b16 %v115
    %v600 = vunpack.c.h.b16 %v115
    %v601 = vunpack.c.l.b16 %v116
    %v602 = vunpack.c.h.b16 %v116
    %v603 = vunpack.c.l.b16 %v117
    %v604 = vunpack.c.h.b16 %v117
    %v605 = vunpack.c.l.b16 %v118
    %v606 = vunpack.c.h.b16 %v118
    %v607 = vunpack.c.l.b16 %v119
    %v608 = vunpack.c.h.b16 %v119
    %v609 = vunpack.c.l.b16 %v120
    %v610 = vunpack.c.h.b16 %v120
    %v611 = vunpack.c.l.b16 %v121
    %v612 = vunpack.c.h.b16 %v121
    %v613 = vunpack.c.l.b16 %v122
    %v614 = vunpack.c.h.b16 %v122
    %v615 = vunpack.c.l.b16 %v123
    %v616 = vunpack.c.h.b16 %v123
    %v617 = vunpack.c.l.b16 %v124
    %v618 = vunpack.c.h.b16 %v124
    %v619 = vunpack.c.l.b16 %v125
    %v620 = vunpack.c.h.b16 %v125
    %v621 = vunpack.c.l.b16 %v126
    %v622 = vunpack.c.h.b16 %v126
    %v623 = vunpack.c.l.b16 %v127
    %v624 = vunpack.c.h.b16 %v127
    %v625 = vunpack.c.l.b16 %v128
    %v626 = vunpack.c.h.b16 %v128
    %v627 = vunpack.c.l.b16 %v129
    %v628 = vunpack.c.h.b16 %v129
    %v629 = vunpack.c.l.b16 %v130
    %v630 = vunpack.c.h.b16 %v130
    %v631 = vunpack.c.l.b16 %v131
    %v632 = vunpack.c.h.b16 %v131
    %v633 = vunpack.c.l.b16 %v132
    %v634 = vunpack.c.h.b16 %v132
    %v635 = vunpack.c.l.b16 %v133
    %v636 = vunpack.c.h.b16 %v133
    %v637 = vunpack.c.l.b16 %v134
    %v638 = vunpack.c.h.b16 %v134
    %v639 = vunpack.c.l.b16 %v135
    %v640 = vunpack.c.h.b16 %v135
    %v641 = vunpack.c.l.b16 %v136
    %v642 = vunpack.c.h.b16 %v136
    %v643 = vunpack.c.l.b16 %v137
    %v644 = vunpack.c.h.b16 %v137
    %v645 = vunpack.c.l.b16 %v138
    %v646 = vunpack.c.h.b16 %v138
    %v647 = vunpack.c.l.b16 %v139
    %v648 = vunpack.c.h.b16 %v139
    %v649 = vunpack.c.l.b16 %v140
    %v650 = vunpack.c.h.b16 %v140
    %v651 = vunpack.c.l.b16 %v141
    %v652 = vunpack.c.h.b16 %v141
    %v653 = vunpack.c.l.b16 %v142
    %v654 = vunpack.c.h.b16 %v142
    %v655 = vunpack.c.l.b16 %v143
    %v656 = vunpack.c.h.b16 %v143
    %v657 = vunpack.c.l.b16 %v144
    %v658 = vunpack.c.h.b16 %v144
    %v659 = vunpack.c.l.b16 %v145
    %v660 = vunpack.c.h.b16 %v145
    %v661 = vunpack.c.l.b16 %v146
    %v662 = vunpack.c.h.b16 %v146
    %v663 = vunpack.c.l.b16 %v147
    %v664 = vunpack.c.h.b16 %v147
    %v665 = vunpack.c.l.b16 %v148
    %v666 = vunpack.c.h.b16 %v148
    %v667 = vunpack.c.l.b16 %v149
    %v668 = vunpack.c.h.b16 %v149
    %v669 = vunpack.c.l.b16 %v150
    %v670 = vunpack.c.h.b16 %v150
    %v671 = vunpack.c.l.b16 %v151
    %v672 = vunpack.c.h.b16 %v151
    %v673 = vunpack.c.l.b16 %v152
    %v674 = vunpack.c.h.b16 %v152
    %v675 = vunpack.c.l.b16 %v153
    %v676 = vunpack.c.h.b16 %v153
    %v677 = vunpack.c.l.b16 %v154
    %v678 = vunpack.c.h.b16 %v154
    %v679 = vunpack.c.l.b16 %v155
    %v680 = vunpack.c.h.b16 %v155
    %v681 = vunpack.c.l.b16 %v156
    %v682 = vunpack.c.h.b16 %v156
    %v683 = vunpack.c.l.b16 %v157
    %v684 = vunpack.c.h.b16 %v157
    %v685 = vunpack.c.l.b16 %v158
    %v686 = vunpack.c.h.b16 %v158
    %v687 = vunpack.c.l.b16 %v159
    %v688 = vunpack.c.h.b16 %v159
    %v689 = vunpack.c.l.b16 %v160
    %v690 = vunpack.c.h.b16 %v160
    %v691 = vunpack.c.l.b16 %v161
    %v692 = vunpack.c.h.b16 %v161
    %v693 = vunpack.c.l.b16 %v162
    %v694 = vunpack.c.h.b16 %v162
    %v695 = vunpack.c.l.b16 %v163
    %v696 = vunpack.c.h.b16 %v163
    %v697 = vunpack.c.l.b16 %v164
    %v698 = vunpack.c.h.b16 %v164
    %v699 = vunpack.c.l.b16 %v165
    %v700 = vunpack.c.h.b16 %v165
    %v701 = vunpack.c.l.b16 %v166
    %v702 = vunpack.c.h.b16 %v166
    %v703 = vunpack.c.l.b16 %v167
    %v704 = vunpack.c.h.b16 %v167
    %v705 = vunpack.c.l.b16 %v168
    %v706 = vunpack.c.h.b16 %v168
    %v707 = vunpack.c.l.b16 %v169
    %v708 = vunpack.c.h.b16 %v169
    %v709 = vunpack.c.l.b16 %v170
    %v710 = vunpack.c.h.b16 %v170
    %v711 = vunpack.c.l.b16 %v171
    %v712 = vunpack.c.h.b16 %v171
    %v713 = vunpack.c.l.b16 %v172
    %v714 = vunpack.c.h.b16 %v172
    %v715 = vunpack.c.l.b16 %v173
    %v716 = vunpack.c.h.b16 %v173
    %v717 = vunpack.c.l.b16 %v174
    %v718 = vunpack.c.h.b16 %v174
    %v719 = vunpack.c.l.b16 %v175
    %v720 = vunpack.c.h.b16 %v175
    %v721 = vunpack.c.l.b16 %v176
    %v722 = vunpack.c.h.b16 %v176
    %v723 = vunpack.c.l.b16 %v177
    %v724 = vunpack.c.h.b16 %v177
    %v725 = vunpack.c.l.b16 %v178
    %v726 = vunpack.c.h.b16 %v178
    %v727 = vunpack.c.l.b16 %v179
    %v728 = vunpack.c.h.b16 %v179
    %v729 = vunpack.c.l.b16 %v180
    %v730 = vunpack.c.h.b16 %v180
    %v731 = vunpack.c.l.b16 %v181
    %v732 = vunpack.c.h.b16 %v181
    %v733 = vunpack.c.l.b16 %v182
    %v734 = vunpack.c.h.b16 %v182
    %v735 = vunpack.c.l.b16 %v183
    %v736 = vunpack.c.h.b16 %v183
    %v737 = vunpack.c.l.b16 %v184
    %v738 = vunpack.c.h.b16 %v184
    %v739 = vunpack.c.l.b16 %v185
    %v740 = vunpack.c.h.b16 %v185
    %v741 = vunpack.c.l.b16 %v186
    %v742 = vunpack.c.h.b16 %v186
    %v743 = vunpack.c.l.b16 %v187
    %v744 = vunpack.c.h.b16 %v187
    %v745 = vunpack.c.l.b16 %v188
    %v746 = vunpack.c.h.b16 %v188
    %v747 = vunpack.c.l.b16 %v189
    %v748 = vunpack.c.h.b16 %v189
    %v749 = vunpack.c.l.b16 %v190
    %v750 = vunpack.c.h.b16 %v190
    %v751 = vunpack.c.l.b16 %v191
    %v752 = vunpack.c.h.b16 %v191
    %v753 = vunpack.c.l.b16 %v192
    %v754 = vunpack.c.h.b16 %v192
    %v755 = vunpack.c.l.b16 %v193
    %v756 = vunpack.c.h.b16 %v193
    %v757 = vunpack.c.l.b16 %v194
    %v758 = vunpack.c.h.b16 %v194
    %v759 = vunpack.c.l.b16 %v195
    %v760 = vunpack.c.h.b16 %v195
    %v761 = vunpack.c.l.b16 %v196
    %v762 = vunpack.c.h.b16 %v196
    %v763 = vunpack.c.l.b16 %v197
    %v764 = vunpack.c.h.b16 %v197
    %v765 = vunpack.c.l.b16 %v198
    %v766 = vunpack.c.h.b16 %v198
    %v767 = vunpack.c.l.b16 %v199
    %v768 = vunpack.c.h.b16 %v199
    %v769 = vunpack.c.l.b16 %v200
    %v770 = vunpack.c.h.b16 %v200
    %v771 = vunpack.c.l.b16 %v201
    %v772 = vunpack.c.h.b16 %v201
    %v773 = vunpack.c.l.b16 %v202
    %v774 = vunpack.c.h.b16 %v202
    %v775 = vunpack.c.l.b16 %v203
    %v776 = vunpack.c.h.b16 %v203
    %v777 = vunpack.c.l.b16 %v204
    %v778 = vunpack.c.h.b16 %v204
    %v779 = vunpack.c.l.b16 %v205
    %v780 = vunpack.c.h.b16 %v205
    %v781 = vunpack.c.l.b16 %v206
    %v782 = vunpack.c.h.b16 %v206
    %v783 = vunpack.c.l.b16 %v207
    %v784 = vunpack.c.h.b16 %v207
    %v785 = vunpack.c.l.b16 %v208
    %v786 = vunpack.c.h.b16 %v208
    %v787 = vunpack.c.l.b16 %v209
    %v788 = vunpack.c.h.b16 %v209
    %v789 = vunpack.c.l.b16 %v210
    %v790 = vunpack.c.h.b16 %v210
    %v791 = vunpack.c.l.b16 %v211
    %v792 = vunpack.c.h.b16 %v211
    %v793 = vunpack.c.l.b16 %v212
    %v794 = vunpack.c.h.b16 %v212
    %v795 = vunpack.c.l.b16 %v213
    %v796 = vunpack.c.h.b16 %v213
    %v797 = vunpack.c.l.b16 %v214
    %v798 = vunpack.c.h.b16 %v214
    %v799 = vunpack.c.l.b16 %v215
    %v800 = vunpack.c.h.b16 %v215
    %v801 = vunpack.c.l.b16 %v216
    %v802 = vunpack.c.h.b16 %v216
    %v803 = vunpack.c.l.b16 %v217
    %v804 = vunpack.c.h.b16 %v217
    %v805 = vunpack.c.l.b16 %v218
    %v806 = vunpack.c.h.b16 %v218
    %v807 = vunpack.c.l.b16 %v219
    %v808 = vunpack.c.h.b16 %v219
    %v809 = vunpack.c.l.b16 %v220
    %v810 = vunpack.c.h.b16 %v220
    %v811 = vunpack.c.l.b16 %v221
    %v812 = vunpack.c.h.b16 %v221
    %v813 = vunpack.c.l.b16 %v222
    %v814 = vunpack.c.h.b16 %v222
    %v815 = vunpack.c.l.b16 %v223
    %v816 = vunpack.c.h.b16 %v223
    %v817 = vunpack.c.l.b16 %v224
    %v818 = vunpack.c.h.b16 %v224
    %v819 = vunpack.c.l.b16 %v225
    %v820 = vunpack.c.h.b16 %v225
    %v821 = vunpack.c.l.b16 %v226
    %v822 = vunpack.c.h.b16 %v226
    %v823 = vunpack.c.l.b16 %v227
    %v824 = vunpack.c.h.b16 %v227
    %v825 = vunpack.c.l.b16 %v228
    %v826 = vunpack.c.h.b16 %v228
    %v827 = vunpack.c.l.b16 %v229
    %v828 = vunpack.c.h.b16 %v229
    %v829 = vunpack.c.l.b16 %v230
    %v830 = vunpack.c.h.b16 %v230
    %v831 = vunpack.c.l.b16 %v231
    %v832 = vunpack.c.h.b16 %v231
    %v833 = vunpack.c.l.b16 %v232
    %v834 = vunpack.c.h.b16 %v232
    %v835 = vunpack.c.l.b16 %v233
    %v836 = vunpack.c.h.b16 %v233
    %v837 = vunpack.c.l.b16 %v234
    %v838 = vunpack.c.h.b16 %v234
    %v839 = vunpack.c.l.b16 %v235
    %v840 = vunpack.c.h.b16 %v235
    %v841 = vunpack.c.l.b16 %v236
    %v842 = vunpack.c.h.b16 %v236
    %v843 = vunpack.c.l.b16 %v237
    %v844 = vunpack.c.h.b16 %v237
    %v845 = vunpack.c.l.b16 %v238
    %v846 = vunpack.c.h.b16 %v238
    %v847 = vunpack.c.l.b16 %v239
    %v848 = vunpack.c.h.b16 %v239
    %v849 = vunpack.c.l.b16 %v240
    %v850 = vunpack.c.h.b16 %v240
    %v851 = vunpack.c.l.b16 %v241
    %v852 = vunpack.c.h.b16 %v241
    %v853 = vunpack.c.l.b16 %v242
    %v854 = vunpack.c.h.b16 %v242
    %v855 = vunpack.c.l.b16 %v243
    %v856 = vunpack.c.h.b16 %v243
    %v857 = vunpack.c.l.b16 %v244
    %v858 = vunpack.c.h.b16 %v244
    %v859 = vunpack.c.l.b16 %v245
    %v860 = vunpack.c.h.b16 %v245
    %v861 = vunpack.c.l.b16 %v246
    %v862 = vunpack.c.h.b16 %v246
    %v863 = vunpack.c.l.b16 %v247
    %v864 = vunpack.c.h.b16 %v247
    %v865 = vunpack.c.l.b16 %v248
    %v866 = vunpack.c.h.b16 %v248
    %v867 = vunpack.c.l.b16 %v249
    %v868 = vunpack.c.h.b16 %v249
    %v869 = vunpack.c.l.b16 %v250
    %v870 = vunpack.c.h.b16 %v250
    %v871 = vunpack.c.l.b16 %v251
    %v872 = vunpack.c.h.b16 %v251
    %v873 = vunpack.c.l.b16 %v252
    %v874 = vunpack.c.h.b16 %v252
    %v875 = vunpack.c.l.b16 %v253
    %v876 = vunpack.c.h.b16 %v253
    %v877 = vunpack.c.l.b16 %v254
    %v878 = vunpack.c.h.b16 %v254
    %v879 = vunpack.c.l.b16 %v255
    %v880 = vunpack.c.h.b16 %v255
    %v881 = vunpack.c.l.b16 %v256
    %v882 = vunpack.c.h.b16 %v256
    %v883 = vunpack.c.l.b16 %v257
    %v884 = vunpack.c.h.b16 %v257
    %v885 = vunpack.c.l.b16 %v258
    %v886 = vunpack.c.h.b16 %v258
    %v887 = vunpack.c.l.b16 %v259
    %v888 = vunpack.c.h.b16 %v259
    %v889 = vunpack.c.l.b16 %v260
    %v890 = vunpack.c.h.b16 %v260
    %v891 = vunpack.c.l.b16 %v261
    %v892 = vunpack.c.h.b16 %v261
    %v893 = vunpack.c.l.b16 %v262
    %v894 = vunpack.c.h.b16 %v262
    %v895 = vunpack.c.l.b16 %v263
    %v896 = vunpack.c.h.b16 %v263
    %v897 = vunpack.c.l.b16 %v264
    %v898 = vunpack.c.h.b16 %v264
    %v899 = vunpack.c.l.b16 %v265
    %v900 = vunpack.c.h.b16 %v265
    %v901 = vunpack.c.l.b16 %v266
    %v902 = vunpack.c.h.b16 %v266
    %v903 = vunpack.c.l.b16 %v267
    %v904 = vunpack.c.h.b16 %v267
    %v905 = vunpack.c.l.b16 %v268
    %v906 = vunpack.c.h.b16 %v268
    %v907 = vunpack.c.l.b16 %v269
    %v908 = vunpack.c.h.b16 %v269
    %v909 = vunpack.c.l.b16 %v270
    %v910 = vunpack.c.h.b16 %v270
    %v911 = vunpack.c.l.b16 %v271
    %v912 = vunpack.c.h.b16 %v271
    %v913 = vunpack.c.l.b16 %v272
    %v914 = vunpack.c.h.b16 %v272
    %v915 = vunpack.c.l.b16 %v273
    %v916 = vunpack.c.h.b16 %v273
    %v917 = vunpack.c.l.b16 %v274
    %v918 = vunpack.c.h.b16 %v274
    %v919 = vunpack.c.l.b16 %v275
    %v920 = vunpack.c.h.b16 %v275
    %v921 = vunpack.c.l.b16 %v276
    %v922 = vunpack.c.h.b16 %v276
    %v923 = vpack.c.b16 %v527, %v523
    %v924 = vpack.c.b16 %v528, %v524
    %v925 = vpack.c.b16 %v529, %v525
    %v926 = vpack.c.b16 %v530, %v526
    %v927 = vpack.c.b16 %v535, %v531
    %v928 = vpack.c.b16 %v536, %v532
    %v929 = vpack.c.b16 %v537, %v533
    %v930 = vpack.c.b16 %v538, %v534
    %v931 = vpack.c.b16 %v543, %v539
    %v932 = vpack.c.b16 %v544, %v540
    %v933 = vpack.c.b16 %v545, %v541
    %v934 = vpack.c.b16 %v546, %v542
    %v935 = vpack.c.b16 %v551, %v547
    %v936 = vpack.c.b16 %v552, %v548
    %v937 = vpack.c.b16 %v553, %v549
    %v938 = vpack.c.b16 %v554, %v550
    %v939 = vpack.c.b16 %v559, %v555
    %v940 = vpack.c.b16 %v560, %v556
    %v941 = vpack.c.b16 %v561, %v557
    %v942 = vpack.c.b16 %v562, %v558
    %v943 = vpack.c.b16 %v567, %v563
    %v944 = vpack.c.b16 %v568, %v564
    %v945 = vpack.c.b16 %v569, %v565
    %v946 = vpack.c.b16 %v570, %v566
    %v947 = vpack.c.b16 %v575, %v571
    %v948 = vpack.c.b16 %v576, %v572
    %v949 = vpack.c.b16 %v577, %v573
    %v950 = vpack.c.b16 %v578, %v574
    %v951 = vpack.c.b16 %v583, %v579
    %v952 = vpack.c.b16 %v584, %v580
    %v953 = vpack.c.b16 %v585, %v581
    %v954 = vpack.c.b16 %v586, %v582
    %v955 = vpack.c.b16 %v591, %v587
    %v956 = vpack.c.b16 %v592, %v588
    %v957 = vpack.c.b16 %v593, %v589
    %v958 = vpack.c.b16 %v594, %v590
    %v959 = vpack.c.b16 %v599, %v595
    %v960 = vpack.c.b16 %v600, %v596
    %v961 = vpack.c.b16 %v601, %v597
    %v962 = vpack.c.b16 %v602, %v598
    %v963 = vpack.c.b16 %v607, %v603
    %v964 = vpack.c.b16 %v608, %v604
    %v965 = vpack.c.b16 %v609, %v605
    %v966 = vpack.c.b16 %v610, %v606
    %v967 = vpack.c.b16 %v615, %v611
    %v968 = vpack.c.b16 %v616, %v612
    %v969 = vpack.c.b16 %v617, %v613
    %v970 = vpack.c.b16 %v618, %v614
    %v971 = vpack.c.b16 %v623, %v619
    %v972 = vpack.c.b16 %v624, %v620
    %v973 = vpack.c.b16 %v625, %v621
    %v974 = vpack.c.b16 %v626, %v622
    %v975 = vpack.c.b16 %v631, %v627
    %v976 = vpack.c.b16 %v632, %v628
    %v977 = vpack.c.b16 %v633, %v629
    %v978 = vpack.c.b16 %v634, %v630
    %v979 = vpack.c.b16 %v639, %v635
    %v980 = vpack.c.b16 %v640, %v636
    %v981 = vpack.c.b16 %v641, %v637
    %v982 = vpack.c.b16 %v642, %v638
    %v983 = vpack.c.b16 %v647, %v643
    %v984 = vpack.c.b16 %v648, %v644
    %v985 = vpack.c.b16 %v649, %v645
    %v986 = vpack.c.b16 %v650, %v646
    %v987 = vpack.c.b16 %v655, %v651
    %v988 = vpack.c.b16 %v656, %v652
    %v989 = vpack.c.b16 %v657, %v653
    %v990 = vpack.c.b16 %v658, %v654
    %v991 = vpack.c.b16 %v663, %v659
    %v992 = vpack.c.b16 %v664, %v660
    %v993 = vpack.c.b16 %v665, %v661
    %v994 = vpack.c.b16 %v666, %v662
    %v995 = vpack.c.b16 %v671, %v667
    %v996 = vpack.c.b16 %v672, %v668
    %v997 = vpack.c.b16 %v673, %v669
    %v998 = vpack.c.b16 %v674, %v670
    %v999 = vpack.c.b16 %v679, %v675
    %v1000 = vpack.c.b16 %v680, %v676
    %v1001 = vpack.c.b16 %v681, %v677
    %v1002 = vpack.c.b16 %v682, %v678
    %v1003 = vpack.c.b16 %v687, %v683
    %v1004 = vpack.c.b16 %v688, %v684
    %v1005 = vpack.c.b16 %v689, %v685
    %v1006 = vpack.c.b16 %v690, %v686
    %v1007 = vpack.c.b16 %v695, %v691
    %v1008 = vpack.c.b16 %v696, %v692
    %v1009 = vpack.c.b16 %v697, %v693
    %v1010 = vpack.c.b16 %v698, %v694
    %v1011 = vpack.c.b16 %v703, %v699
    %v1012 = vpack.c.b16 %v704, %v700
    %v1013 = vpack.c.b16 %v705, %v701
    %v1014 = vpack.c.b16 %v706, %v702
    %v1015 = vpack.c.b16 %v711, %v707
    %v1016 = vpack.c.b16 %v712, %v708
    %v1017 = vpack.c.b16 %v713, %v709
    %v1018 = vpack.c.b16 %v714, %v710
    %v1019 = vpack.c.b16 %v719, %v715
    %v1020 = vpack.c.b16 %v720, %v716
    %v1021 = vpack.c.b16 %v721, %v717
    %v1022 = vpack.c.b16 %v722, %v718
    %v1023 = vpack.c.b16 %v727, %v723
    %v1024 = vpack.c.b16 %v728, %v724
    %v1025 = vpack.c.b16 %v729, %v725
    %v1026 = vpack.c.b16 %v730, %v726
    %v1027 = vpack.c.b16 %v735, %v731
    %v1028 = vpack.c.b16 %v736, %v732
    %v1029 = vpack.c.b16 %v737, %v733
    %v1030 = vpack.c.b16 %v738, %v734
    %v1031 = vpack.c.b16 %v743, %v739
    %v1032 = vpack.c.b16 %v744, %v740
    %v1033 = vpack.c.b16 %v745, %v741
    %v1034 = vpack.c.b16 %v746, %v742
    %v1035 = vpack.c.b16 %v751, %v747
    %v1036 = vpack.c.b16 %v752, %v748
    %v1037 = vpack.c.b16 %v753, %v749
    %v1038 = vpack.c.b16 %v754, %v750
    %v1039 = vpack.c.b16 %v759, %v755
    %v1040 = vpack.c.b16 %v760, %v756
    %v1041 = vpack.c.b16 %v761, %v757
    %v1042 = vpack.c.b16 %v762, %v758
    %v1043 = vpack.c.b16 %v767, %v763
    %v1044 = vpack.c.b16 %v768, %v764
    %v1045 = vpack.c.b16 %v769, %v765
    %v1046 = vpack.c.b16 %v770, %v766
    %v1047 = vpack.c.b16 %v775, %v771
    %v1048 = vpack.c.b16 %v776, %v772
    %v1049 = vpack.c.b16 %v777, %v773
    %v1050 = vpack.c.b16 %v778, %v774
    %v1051 = vpack.c.b16 %v783, %v779
    %v1052 = vpack.c.b16 %v784, %v780
    %v1053 = vpack.c.b16 %v785, %v781
    %v1054 = vpack.c.b16 %v786, %v782
    %v1055 = vpack.c.b16 %v791, %v787
    %v1056 = vpack.c.b16 %v792, %v788
    %v1057 = vpack.c.b16 %v793, %v789
    %v1058 = vpack.c.b16 %v794, %v790
    %v1059 = vpack.c.b16 %v799, %v795
    %v1060 = vpack.c.b16 %v800, %v796
    %v1061 = vpack.c.b16 %v801, %v797
    %v1062 = vpack.c.b16 %v802, %v798
    %v1063 = vpack.c.b16 %v807, %v803
    %v1064 = vpack.c.b16 %v808, %v804
    %v1065 = vpack.c.b16 %v809, %v805
    %v1066 = vpack.c.b16 %v810, %v806
    %v1067 = vpack.c.b16 %v815, %v811
    %v1068 = vpack.c.b16 %v816, %v812
    %v1069 = vpack.c.b16 %v817, %v813
    %v1070 = vpack.c.b16 %v818, %v814
    %v1071 = vpack.c.b16 %v823, %v819
    %v1072 = vpack.c.b16 %v824, %v820
    %v1073 = vpack.c.b16 %v825, %v821
    %v1074 = vpack.c.b16 %v826, %v822
    %v1075 = vpack.c.b16 %v831, %v827
    %v1076 = vpack.c.b16 %v832, %v828
    %v1077 = vpack.c.b16 %v833, %v829
    %v1078 = vpack.c.b16 %v834, %v830
    %v1079 = vpack.c.b16 %v839, %v835
    %v1080 = vpack.c.b16 %v840, %v836
    %v1081 = vpack.c.b16 %v841, %v837
    %v1082 = vpack.c.b16 %v842, %v838
    %v1083 = vpack.c.b16 %v847, %v843
    %v1084 = vpack.c.b16 %v848, %v844
    %v1085 = vpack.c.b16 %v849, %v845
    %v1086 = vpack.c.b16 %v850, %v846
    %v1087 = vpack.c.b16 %v855, %v851
    %v1088 = vpack.c.b16 %v856, %v852
    %v1089 = vpack.c.b16 %v857, %v853
    %v1090 = vpack.c.b16 %v858, %v854
    %v1091 = vpack.c.b16 %v863, %v859
    %v1092 = vpack.c.b16 %v864, %v860
    %v1093 = vpack.c.b16 %v865, %v861
    %v1094 = vpack.c.b16 %v866, %v862
    %v1095 = vpack.c.b16 %v871, %v867
    %v1096 = vpack.c.b16 %v872, %v868
    %v1097 = vpack.c.b16 %v873, %v869
    %v1098 = vpack.c.b16 %v874, %v870
    %v1099 = vpack.c.b16 %v879, %v875
    %v1100 = vpack.c.b16 %v880, %v876
    %v1101 = vpack.c.b16 %v881, %v877
    %v1102 = vpack.c.b16 %v882, %v878
    %v1103 = vpack.c.b16 %v887, %v883
    %v1104 = vpack.c.b16 %v888, %v884
    %v1105 = vpack.c.b16 %v889, %v885
    %v1106 = vpack.c.b16 %v890, %v886
    %v1107 = vpack.c.b16 %v895, %v891
    %v1108 = vpack.c.b16 %v896, %v892
    %v1109 = vpack.c.b16 %v897, %v893
    %v1110 = vpack.c.b16 %v898, %v894
    %v1111 = vpack.c.b16 %v903, %v899
    %v1112 = vpack.c.b16 %v904, %v900
    %v1113 = vpack.c.b16 %v905, %v901
    %v1114 = vpack.c.b16 %v906, %v902
    %v1115 = vpack.c.b16 %v911, %v907
    %v1116 = vpack.c.b16 %v912, %v908
    %v1117 = vpack.c.b16 %v913, %v909
    %v1118 = vpack.c.b16 %v914, %v910
    %v1119 = vpack.c.b16 %v919, %v915
    %v1120 = vpack.c.b16 %v920, %v916
    %v1121 = vpack.c.b16 %v921, %v917
    %v1122 = vpack.c.b16 %v922, %v918
    %vm1323 = vcmask 261120
    %v1325 = vsel %vm1323, %v316, 0
    %1327 = vmatprep.subr.bf16.mxu0 %v952
    %1328 = vmatpush1.bf16.msra.mxu0 %v951
    %1329 = vmatprep.subr.bf16.mxu0 %v948
    %1330 = vmatpush1.bf16.msra.mxu0 %v947
    %1331 = vmatprep.subr.bf16.mxu0 %v944
    %1332 = vmatpush1.bf16.msra.mxu0 %v943
    %1333 = vmatprep.subr.bf16.mxu0 %v940
    %1334 = vmatpush1.bf16.msra.mxu0 %v939
    %1335 = vmatprep.subr.bf16.mxu0 %v936
    %1336 = vmatpush1.bf16.msra.mxu0 %v935
    %1337 = vmatprep.subr.bf16.mxu0 %v932
    %1338 = vmatpush1.bf16.msra.mxu0 %v931
    %1339 = vmatprep.subr.bf16.mxu0 %v928
    %1340 = vmatpush1.bf16.msra.mxu0 %v927
    %1341 = vmatprep.subr.bf16.mxu0 %v924
    %1342 = vmatpush1.bf16.msra.mxu0 %v923
    %1343 = vmatprep.subr.bf16.mxu0 %v984
    %1344 = vmatpush2.bf16.msra.mxu0 %v983
    %1345 = vmatprep.subr.bf16.mxu0 %v980
    %1346 = vmatpush2.bf16.msra.mxu0 %v979
    %1347 = vmatprep.subr.bf16.mxu0 %v976
    %1348 = vmatpush2.bf16.msra.mxu0 %v975
    %1349 = vmatprep.subr.bf16.mxu0 %v972
    %1350 = vmatpush2.bf16.msra.mxu0 %v971
    %1351 = vmatprep.subr.bf16.mxu0 %v968
    %1352 = vmatpush2.bf16.msra.mxu0 %v967
    %1353 = vmatprep.subr.bf16.mxu0 %v964
    %1354 = vmatpush2.bf16.msra.mxu0 %v963
    %1355 = vmatprep.subr.bf16.mxu0 %v960
    %1356 = vmatpush2.bf16.msra.mxu0 %v959
    %1357 = vmatprep.subr.bf16.mxu0 %v956
    %1358 = vmatpush2.bf16.msra.mxu0 %v955
    %1359 = vmatprep.mubr.bf16.mxu0 %v311
    %1360 = vmatmul.mubr.bf16.gmra.mxu0 %v310
    %v1361 = vpop.f32.mrf.mxu0
    %v1362 = vadd.f32 %v282, %v1361
    %v1363 = vpop.f32.mrf.mxu0
    %v1364 = vadd.f32 %v286, %v1363
    %v1365 = vpop.f32.mrf.mxu0
    %v1366 = vpop.f32.mrf.mxu0
    %1367 = vdwg.mxu0
    %1368 = vmatprep.subr.bf16.mxu0 %v1016
    %1369 = vmatpush1.bf16.msra.mxu0 %v1015
    %1370 = vmatprep.subr.bf16.mxu0 %v1012
    %1371 = vmatpush1.bf16.msra.mxu0 %v1011
    %1372 = vmatprep.subr.bf16.mxu0 %v1008
    %1373 = vmatpush1.bf16.msra.mxu0 %v1007
    %1374 = vmatprep.subr.bf16.mxu0 %v1004
    %1375 = vmatpush1.bf16.msra.mxu0 %v1003
    %1376 = vmatprep.subr.bf16.mxu0 %v1000
    %1377 = vmatpush1.bf16.msra.mxu0 %v999
    %1378 = vmatprep.subr.bf16.mxu0 %v996
    %1379 = vmatpush1.bf16.msra.mxu0 %v995
    %1380 = vmatprep.subr.bf16.mxu0 %v992
    %1381 = vmatpush1.bf16.msra.mxu0 %v991
    %1382 = vmatprep.subr.bf16.mxu0 %v988
    %1383 = vmatpush1.bf16.msra.mxu0 %v987
    %1384 = vmatprep.subr.bf16.mxu0 %v1048
    %1385 = vmatpush2.bf16.msra.mxu0 %v1047
    %1386 = vmatprep.subr.bf16.mxu0 %v1044
    %1387 = vmatpush2.bf16.msra.mxu0 %v1043
    %1388 = vmatprep.subr.bf16.mxu0 %v1040
    %1389 = vmatpush2.bf16.msra.mxu0 %v1039
    %1390 = vmatprep.subr.bf16.mxu0 %v1036
    %1391 = vmatpush2.bf16.msra.mxu0 %v1035
    %1392 = vmatprep.subr.bf16.mxu0 %v1032
    %1393 = vmatpush2.bf16.msra.mxu0 %v1031
    %1394 = vmatprep.subr.bf16.mxu0 %v1028
    %1395 = vmatpush2.bf16.msra.mxu0 %v1027
    %1396 = vmatprep.subr.bf16.mxu0 %v1024
    %1397 = vmatpush2.bf16.msra.mxu0 %v1023
    %1398 = vmatprep.subr.bf16.mxu0 %v1020
    %1399 = vmatpush2.bf16.msra.mxu0 %v1019
    %1400 = vmatprep.mubr.bf16.mxu0 %v313
    %1401 = vmatmul.mubr.bf16.gmra.mxu0 %v312
    %v1402 = vpop.f32.mrf.mxu0
    %v1403 = vadd.f32 %v1362, %v1402
    %v1404 = vpop.f32.mrf.mxu0
    %v1405 = vadd.f32 %v1364, %v1404
    %v1406 = vpop.f32.mrf.mxu0
    %v1407 = vpop.f32.mrf.mxu0
    %1408 = vdwg.mxu0
    %1409 = vmatprep.subr.bf16.mxu0 %v1080
    %1410 = vmatpush1.bf16.msra.mxu0 %v1079
    %1411 = vmatprep.subr.bf16.mxu0 %v1076
    %1412 = vmatpush1.bf16.msra.mxu0 %v1075
    %1413 = vmatprep.subr.bf16.mxu0 %v1072
    %1414 = vmatpush1.bf16.msra.mxu0 %v1071
    %1415 = vmatprep.subr.bf16.mxu0 %v1068
    %1416 = vmatpush1.bf16.msra.mxu0 %v1067
    %1417 = vmatprep.subr.bf16.mxu0 %v1064
    %1418 = vmatpush1.bf16.msra.mxu0 %v1063
    %1419 = vmatprep.subr.bf16.mxu0 %v1060
    %1420 = vmatpush1.bf16.msra.mxu0 %v1059
    %1421 = vmatprep.subr.bf16.mxu0 %v1056
    %1422 = vmatpush1.bf16.msra.mxu0 %v1055
    %1423 = vmatprep.subr.bf16.mxu0 %v1052
    %1424 = vmatpush1.bf16.msra.mxu0 %v1051
    %1425 = vmatprep.subr.bf16.mxu0 %v1112
    %1426 = vmatpush2.bf16.msra.mxu0 %v1111
    %1427 = vmatprep.subr.bf16.mxu0 %v1108
    %1428 = vmatpush2.bf16.msra.mxu0 %v1107
    %1429 = vmatprep.subr.bf16.mxu0 %v1104
    %1430 = vmatpush2.bf16.msra.mxu0 %v1103
    %1431 = vmatprep.subr.bf16.mxu0 %v1100
    %1432 = vmatpush2.bf16.msra.mxu0 %v1099
    %1433 = vmatprep.subr.bf16.mxu0 %v1096
    %1434 = vmatpush2.bf16.msra.mxu0 %v1095
    %1435 = vmatprep.subr.bf16.mxu0 %v1092
    %1436 = vmatpush2.bf16.msra.mxu0 %v1091
    %1437 = vmatprep.subr.bf16.mxu0 %v1088
    %1438 = vmatpush2.bf16.msra.mxu0 %v1087
    %1439 = vmatprep.subr.bf16.mxu0 %v1084
    %1440 = vmatpush2.bf16.msra.mxu0 %v1083
    %1441 = vmatprep.mubr.bf16.mxu0 %v315
    %1442 = vmatmul.mubr.bf16.gmra.mxu0 %v314
    %v1443 = vpop.f32.mrf.mxu0
    %v1444 = vadd.f32 %v1403, %v1443
    %v1445 = vpop.f32.mrf.mxu0
    %v1446 = vadd.f32 %v1405, %v1445
    %v1447 = vpop.f32.mrf.mxu0
    %v1448 = vpop.f32.mrf.mxu0
    %1449 = vdwg.mxu0
    %1450 = vmatprep.subr.bf16.mxu0 0
    %1451 = vmatpush1.bf16.msra.mxu0 0
    %1452 = vmatprep.subr.bf16.mxu0 0
    %1453 = vmatpush1.bf16.msra.mxu0 0
    %1454 = vmatprep.subr.bf16.mxu0 0
    %1455 = vmatpush1.bf16.msra.mxu0 0
    %1456 = vmatprep.subr.bf16.mxu0 0
    %1457 = vmatpush1.bf16.msra.mxu0 0
    %1458 = vmatprep.subr.bf16.mxu0 0
    %1459 = vmatpush1.bf16.msra.mxu0 0
    %1460 = vmatprep.subr.bf16.mxu0 0
    %1461 = vmatpush1.bf16.msra.mxu0 0
    %1462 = vmatprep.subr.bf16.mxu0 %v1120
    %1463 = vmatpush1.bf16.msra.mxu0 %v1119
    %1464 = vmatprep.subr.bf16.mxu0 %v1116
    %1465 = vmatpush1.bf16.msra.mxu0 %v1115
    %1466 = vmatprep.subr.bf16.mxu0 0
    %1467 = vmatpush2.bf16.msra.mxu0 0
    %1468 = vmatprep.subr.bf16.mxu0 0
    %1469 = vmatpush2.bf16.msra.mxu0 0
    %1470 = vmatprep.subr.bf16.mxu0 0
    %1471 = vmatpush2.bf16.msra.mxu0 0
    %1472 = vmatprep.subr.bf16.mxu0 0
    %1473 = vmatpush2.bf16.msra.mxu0 0
    %1474 = vmatprep.subr.bf16.mxu0 0
    %1475 = vmatpush2.bf16.msra.mxu0 0
    %1476 = vmatprep.subr.bf16.mxu0 0
    %1477 = vmatpush2.bf16.msra.mxu0 0
    %1478 = vmatprep.subr.bf16.mxu0 0
    %1479 = vmatpush2.bf16.msra.mxu0 0
    %1480 = vmatprep.subr.bf16.mxu0 0
    %1481 = vmatpush2.bf16.msra.mxu0 0
    %1482 = vmatprep.mubr.bf16.mxu0 0
    %1483 = vmatmul.mubr.bf16.gmra.mxu0 %v1325
    %v1484 = vpop.f32.mrf.mxu0
    %v1485 = vadd.f32 %v1444, %v1484
    %v1486 = vpop.f32.mrf.mxu0
    %v1487 = vadd.f32 %v1446, %v1486
    %v1488 = vpop.f32.mrf.mxu0
    %v1489 = vpop.f32.mrf.mxu0
    %1490 = vdwg.mxu0
    %1491 = vmatprep.subr.bf16.mxu0 %v954
    %1492 = vmatpush1.bf16.msra.mxu0 %v953
    %1493 = vmatprep.subr.bf16.mxu0 %v950
    %1494 = vmatpush1.bf16.msra.mxu0 %v949
    %1495 = vmatprep.subr.bf16.mxu0 %v946
    %1496 = vmatpush1.bf16.msra.mxu0 %v945
    %1497 = vmatprep.subr.bf16.mxu0 %v942
    %1498 = vmatpush1.bf16.msra.mxu0 %v941
    %1499 = vmatprep.subr.bf16.mxu0 %v938
    %1500 = vmatpush1.bf16.msra.mxu0 %v937
    %1501 = vmatprep.subr.bf16.mxu0 %v934
    %1502 = vmatpush1.bf16.msra.mxu0 %v933
    %1503 = vmatprep.subr.bf16.mxu0 %v930
    %1504 = vmatpush1.bf16.msra.mxu0 %v929
    %1505 = vmatprep.subr.bf16.mxu0 %v926
    %1506 = vmatpush1.bf16.msra.mxu0 %v925
    %1507 = vmatprep.subr.bf16.mxu0 %v986
    %1508 = vmatpush2.bf16.msra.mxu0 %v985
    %1509 = vmatprep.subr.bf16.mxu0 %v982
    %1510 = vmatpush2.bf16.msra.mxu0 %v981
    %1511 = vmatprep.subr.bf16.mxu0 %v978
    %1512 = vmatpush2.bf16.msra.mxu0 %v977
    %1513 = vmatprep.subr.bf16.mxu0 %v974
    %1514 = vmatpush2.bf16.msra.mxu0 %v973
    %1515 = vmatprep.subr.bf16.mxu0 %v970
    %1516 = vmatpush2.bf16.msra.mxu0 %v969
    %1517 = vmatprep.subr.bf16.mxu0 %v966
    %1518 = vmatpush2.bf16.msra.mxu0 %v965
    %1519 = vmatprep.subr.bf16.mxu0 %v962
    %1520 = vmatpush2.bf16.msra.mxu0 %v961
    %1521 = vmatprep.subr.bf16.mxu0 %v958
    %1522 = vmatpush2.bf16.msra.mxu0 %v957
    %1523 = vmatprep.mubr.bf16.mxu0 %v311
    %1524 = vmatmul.mubr.bf16.gmra.mxu0 %v310
    %v1525 = vpop.f32.mrf.mxu0
    %v1526 = vadd.f32 %v290, %v1525
    %v1527 = vpop.f32.mrf.mxu0
    %v1528 = vadd.f32 %v294, %v1527
    %v1529 = vpop.f32.mrf.mxu0
    %v1530 = vpop.f32.mrf.mxu0
    %1531 = vdwg.mxu0
    %1532 = vmatprep.subr.bf16.mxu0 %v1018
    %1533 = vmatpush1.bf16.msra.mxu0 %v1017
    %1534 = vmatprep.subr.bf16.mxu0 %v1014
    %1535 = vmatpush1.bf16.msra.mxu0 %v1013
    %1536 = vmatprep.subr.bf16.mxu0 %v1010
    %1537 = vmatpush1.bf16.msra.mxu0 %v1009
    %1538 = vmatprep.subr.bf16.mxu0 %v1006
    %1539 = vmatpush1.bf16.msra.mxu0 %v1005
    %1540 = vmatprep.subr.bf16.mxu0 %v1002
    %1541 = vmatpush1.bf16.msra.mxu0 %v1001
    %1542 = vmatprep.subr.bf16.mxu0 %v998
    %1543 = vmatpush1.bf16.msra.mxu0 %v997
    %1544 = vmatprep.subr.bf16.mxu0 %v994
    %1545 = vmatpush1.bf16.msra.mxu0 %v993
    %1546 = vmatprep.subr.bf16.mxu0 %v990
    %1547 = vmatpush1.bf16.msra.mxu0 %v989
    %1548 = vmatprep.subr.bf16.mxu0 %v1050
    %1549 = vmatpush2.bf16.msra.mxu0 %v1049
    %1550 = vmatprep.subr.bf16.mxu0 %v1046
    %1551 = vmatpush2.bf16.msra.mxu0 %v1045
    %1552 = vmatprep.subr.bf16.mxu0 %v1042
    %1553 = vmatpush2.bf16.msra.mxu0 %v1041
    %1554 = vmatprep.subr.bf16.mxu0 %v1038
    %1555 = vmatpush2.bf16.msra.mxu0 %v1037
    %1556 = vmatprep.subr.bf16.mxu0 %v1034
    %1557 = vmatpush2.bf16.msra.mxu0 %v1033
    %1558 = vmatprep.subr.bf16.mxu0 %v1030
    %1559 = vmatpush2.bf16.msra.mxu0 %v1029
    %1560 = vmatprep.subr.bf16.mxu0 %v1026
    %1561 = vmatpush2.bf16.msra.mxu0 %v1025
    %1562 = vmatprep.subr.bf16.mxu0 %v1022
    %1563 = vmatpush2.bf16.msra.mxu0 %v1021
    %1564 = vmatprep.mubr.bf16.mxu0 %v313
    %1565 = vmatmul.mubr.bf16.gmra.mxu0 %v312
    %v1566 = vpop.f32.mrf.mxu0
    %v1567 = vadd.f32 %v1526, %v1566
    %v1568 = vpop.f32.mrf.mxu0
    %v1569 = vadd.f32 %v1528, %v1568
    %v1570 = vpop.f32.mrf.mxu0
    %v1571 = vpop.f32.mrf.mxu0
    %1572 = vdwg.mxu0
    %1573 = vmatprep.subr.bf16.mxu0 %v1082
    %1574 = vmatpush1.bf16.msra.mxu0 %v1081
    %1575 = vmatprep.subr.bf16.mxu0 %v1078
    %1576 = vmatpush1.bf16.msra.mxu0 %v1077
    %1577 = vmatprep.subr.bf16.mxu0 %v1074
    %1578 = vmatpush1.bf16.msra.mxu0 %v1073
    %1579 = vmatprep.subr.bf16.mxu0 %v1070
    %1580 = vmatpush1.bf16.msra.mxu0 %v1069
    %1581 = vmatprep.subr.bf16.mxu0 %v1066
    %1582 = vmatpush1.bf16.msra.mxu0 %v1065
    %1583 = vmatprep.subr.bf16.mxu0 %v1062
    %1584 = vmatpush1.bf16.msra.mxu0 %v1061
    %1585 = vmatprep.subr.bf16.mxu0 %v1058
    %1586 = vmatpush1.bf16.msra.mxu0 %v1057
    %1587 = vmatprep.subr.bf16.mxu0 %v1054
    %1588 = vmatpush1.bf16.msra.mxu0 %v1053
    %1589 = vmatprep.subr.bf16.mxu0 %v1114
    %1590 = vmatpush2.bf16.msra.mxu0 %v1113
    %1591 = vmatprep.subr.bf16.mxu0 %v1110
    %1592 = vmatpush2.bf16.msra.mxu0 %v1109
    %1593 = vmatprep.subr.bf16.mxu0 %v1106
    %1594 = vmatpush2.bf16.msra.mxu0 %v1105
    %1595 = vmatprep.subr.bf16.mxu0 %v1102
    %1596 = vmatpush2.bf16.msra.mxu0 %v1101
    %1597 = vmatprep.subr.bf16.mxu0 %v1098
    %1598 = vmatpush2.bf16.msra.mxu0 %v1097
    %1599 = vmatprep.subr.bf16.mxu0 %v1094
    %1600 = vmatpush2.bf16.msra.mxu0 %v1093
    %1601 = vmatprep.subr.bf16.mxu0 %v1090
    %1602 = vmatpush2.bf16.msra.mxu0 %v1089
    %1603 = vmatprep.subr.bf16.mxu0 %v1086
    %1604 = vmatpush2.bf16.msra.mxu0 %v1085
    %1605 = vmatprep.mubr.bf16.mxu0 %v315
    %1606 = vmatmul.mubr.bf16.gmra.mxu0 %v314
    %v1607 = vpop.f32.mrf.mxu0
    %v1608 = vadd.f32 %v1567, %v1607
    %v1609 = vpop.f32.mrf.mxu0
    %v1610 = vadd.f32 %v1569, %v1609
    %v1611 = vpop.f32.mrf.mxu0
    %v1612 = vpop.f32.mrf.mxu0
    %1613 = vdwg.mxu0
    %1614 = vmatprep.subr.bf16.mxu0 0
    %1615 = vmatpush1.bf16.msra.mxu0 0
    %1616 = vmatprep.subr.bf16.mxu0 0
    %1617 = vmatpush1.bf16.msra.mxu0 0
    %1618 = vmatprep.subr.bf16.mxu0 0
    %1619 = vmatpush1.bf16.msra.mxu0 0
    %1620 = vmatprep.subr.bf16.mxu0 0
    %1621 = vmatpush1.bf16.msra.mxu0 0
    %1622 = vmatprep.subr.bf16.mxu0 0
    %1623 = vmatpush1.bf16.msra.mxu0 0
    %1624 = vmatprep.subr.bf16.mxu0 0
    %1625 = vmatpush1.bf16.msra.mxu0 0
    %1626 = vmatprep.subr.bf16.mxu0 %v1122
    %1627 = vmatpush1.bf16.msra.mxu0 %v1121
    %1628 = vmatprep.subr.bf16.mxu0 %v1118
    %1629 = vmatpush1.bf16.msra.mxu0 %v1117
    %1630 = vmatprep.subr.bf16.mxu0 0
    %1631 = vmatpush2.bf16.msra.mxu0 0
    %1632 = vmatprep.subr.bf16.mxu0 0
    %1633 = vmatpush2.bf16.msra.mxu0 0
    %1634 = vmatprep.subr.bf16.mxu0 0
    %1635 = vmatpush2.bf16.msra.mxu0 0
    %1636 = vmatprep.subr.bf16.mxu0 0
    %1637 = vmatpush2.bf16.msra.mxu0 0
    %1638 = vmatprep.subr.bf16.mxu0 0
    %1639 = vmatpush2.bf16.msra.mxu0 0
    %1640 = vmatprep.subr.bf16.mxu0 0
    %1641 = vmatpush2.bf16.msra.mxu0 0
    %1642 = vmatprep.subr.bf16.mxu0 0
    %1643 = vmatpush2.bf16.msra.mxu0 0
    %1644 = vmatprep.subr.bf16.mxu0 0
    %1645 = vmatpush2.bf16.msra.mxu0 0
    %1646 = vmatprep.mubr.bf16.mxu0 0
    %1647 = vmatmul.mubr.bf16.gmra.mxu0 %v1325
    %v1648 = vpop.f32.mrf.mxu0
    %v1649 = vadd.f32 %v1608, %v1648
    %v1650 = vpop.f32.mrf.mxu0
    %v1651 = vadd.f32 %v1610, %v1650
    %v1652 = vpop.f32.mrf.mxu0
    %v1653 = vpop.f32.mrf.mxu0
    %1654 = vdwg.mxu0
    %v1655 = vmax.f32 %v1485, 0.0
    %v1656 = vmax.f32 %v1487, 0.0
    %v1657 = vmax.f32 %v1649, 0.0
    %v1658 = vmax.f32 %v1651, 0.0
    %v1659 = vpack.c.bf16 %v1655, %v1655
    %v1660 = vpack.c.bf16 %v1656, %v1656
    %v1661 = vpack.c.bf16 %v1657, %v1657
    %v1662 = vpack.c.bf16 %v1658, %v1658
    %v1663 = vld [vmem:[#allocation8] sm:$0xf]
    %v1664 = vld [vmem:[#allocation8 + $0x4] sm:$0xf]
    %v1665 = vld [vmem:[#allocation8 + $0x8] sm:$0xf]
    %v1666 = vld [vmem:[#allocation8 + $0xc] sm:$0xf]
    %v1667 = vld [vmem:[#allocation8 + $0x10] sm:$0xf]
    %v1668 = vld [vmem:[#allocation8 + $0x14] sm:$0xf]
    %v1669 = vld [vmem:[#allocation8 + $0x18] sm:$0xf]
    %v1670 = vld [vmem:[#allocation8 + $0x1c] sm:$0xf]
    %v1671 = vld [vmem:[#allocation8 + $0x20] sm:$0xf]
    %v1672 = vld [vmem:[#allocation8 + $0x24] sm:$0xf]
    %v1673 = vld [vmem:[#allocation8 + $0x28] sm:$0xf]
    %v1674 = vld [vmem:[#allocation8 + $0x2c] sm:$0xf]
    %v1675 = vld [vmem:[#allocation8 + $0x30] sm:$0xf]
    %v1676 = vld [vmem:[#allocation8 + $0x34] sm:$0xf]
    %v1677 = vld [vmem:[#allocation8 + $0x38] sm:$0xf]
    %v1678 = vld [vmem:[#allocation8 + $0x3c] sm:$0xf]
    %v1679 = vld [vmem:[#allocation8 + $0x40] sm:$0xf]
    %v1680 = vld [vmem:[#allocation8 + $0x44] sm:$0xf]
    %v1681 = vld [vmem:[#allocation8 + $0x48] sm:$0xf]
    %v1682 = vld [vmem:[#allocation8 + $0x4c] sm:$0xf]
    %v1683 = vld [vmem:[#allocation8 + $0x50] sm:$0xf]
    %v1684 = vld [vmem:[#allocation8 + $0x54] sm:$0xf]
    %v1685 = vld [vmem:[#allocation8 + $0x58] sm:$0xf]
    %v1686 = vld [vmem:[#allocation8 + $0x5c] sm:$0xf]
    %v1687 = vld [vmem:[#allocation8 + $0x60] sm:$0xf]
    %v1688 = vld [vmem:[#allocation8 + $0x64] sm:$0xf]
    %v1689 = vld [vmem:[#allocation8 + $0x68] sm:$0xf]
    %v1690 = vld [vmem:[#allocation8 + $0x6c] sm:$0xf]
    %v1691 = vld [vmem:[#allocation8 + $0x70] sm:$0xf]
    %v1692 = vld [vmem:[#allocation8 + $0x74] sm:$0xf]
    %v1693 = vld [vmem:[#allocation8 + $0x78] sm:$0xf]
    %v1694 = vld [vmem:[#allocation8 + $0x7c] sm:$0xf]
    %v1695 = vld [vmem:[#allocation8 + $0x80] sm:$0xf]
    %v1696 = vld [vmem:[#allocation8 + $0x84] sm:$0xf]
    %v1697 = vld [vmem:[#allocation8 + $0x88] sm:$0xf]
    %v1698 = vld [vmem:[#allocation8 + $0x8c] sm:$0xf]
    %v1699 = vld [vmem:[#allocation8 + $0x90] sm:$0xf]
    %v1700 = vld [vmem:[#allocation8 + $0x94] sm:$0xf]
    %v1701 = vld [vmem:[#allocation8 + $0x98] sm:$0xf]
    %v1702 = vld [vmem:[#allocation8 + $0x9c] sm:$0xf]
    %v1703 = vld [vmem:[#allocation8 + $0xa0] sm:$0xf]
    %v1704 = vld [vmem:[#allocation8 + $0xa4] sm:$0xf]
    %v1705 = vld [vmem:[#allocation8 + $0xa8] sm:$0xf]
    %v1706 = vld [vmem:[#allocation8 + $0xac] sm:$0xf]
    %v1707 = vld [vmem:[#allocation8 + $0xb0] sm:$0xf]
    %v1708 = vld [vmem:[#allocation8 + $0xb4] sm:$0xf]
    %v1709 = vld [vmem:[#allocation8 + $0xb8] sm:$0xf]
    %v1710 = vld [vmem:[#allocation8 + $0xbc] sm:$0xf]
    %v1711 = vld [vmem:[#allocation8 + $0xc0] sm:$0xf]
    %v1712 = vld [vmem:[#allocation8 + $0xc4] sm:$0xf]
    %v1713 = vld [vmem:[#allocation8 + $0xc8] sm:$0xf]
    %v1714 = vld [vmem:[#allocation8 + $0xcc] sm:$0xf]
    %v1715 = vld [vmem:[#allocation8 + $0xd0] sm:$0xf]
    %v1716 = vld [vmem:[#allocation8 + $0xd4] sm:$0xf]
    %v1717 = vld [vmem:[#allocation8 + $0xd8] sm:$0xf]
    %v1718 = vld [vmem:[#allocation8 + $0xdc] sm:$0xf]
    %v1719 = vld [vmem:[#allocation8 + $0xe0] sm:$0xf]
    %v1720 = vld [vmem:[#allocation8 + $0xe4] sm:$0xf]
    %v1721 = vld [vmem:[#allocation8 + $0xe8] sm:$0xf]
    %v1722 = vld [vmem:[#allocation8 + $0xec] sm:$0xf]
    %v1723 = vld [vmem:[#allocation8 + $0xf0] sm:$0xf]
    %v1724 = vld [vmem:[#allocation8 + $0xf4] sm:$0xf]
    %v1725 = vld [vmem:[#allocation8 + $0xf8] sm:$0xf]
    %v1726 = vld [vmem:[#allocation8 + $0xfc] sm:$0xf]
    %v1727 = vld [vmem:[%s4] sm:$0x1]
    %v1729 = vlaneseq
    %v1730 = vshrl.u32 %v1729, 7
    %v1731 = vsub.s32 0, %v1730
    %v1732 = vrot.slane %v1727, %v1731
    %v1798 = vunpack.c.l.b16 %v1663
    %v1799 = vunpack.c.l.b16 %v1664
    %v1800 = vunpack.c.l.b16 %v1665
    %v1801 = vunpack.c.l.b16 %v1666
    %v1802 = vunpack.c.l.b16 %v1667
    %v1803 = vunpack.c.l.b16 %v1668
    %v1804 = vunpack.c.l.b16 %v1669
    %v1805 = vunpack.c.l.b16 %v1670
    %v1806 = vunpack.c.l.b16 %v1671
    %v1807 = vunpack.c.l.b16 %v1672
    %v1808 = vunpack.c.l.b16 %v1673
    %v1809 = vunpack.c.l.b16 %v1674
    %v1810 = vunpack.c.l.b16 %v1675
    %v1811 = vunpack.c.l.b16 %v1676
    %v1812 = vunpack.c.l.b16 %v1677
    %v1813 = vunpack.c.l.b16 %v1678
    %v1814 = vunpack.c.l.b16 %v1679
    %v1815 = vunpack.c.l.b16 %v1680
    %v1816 = vunpack.c.l.b16 %v1681
    %v1817 = vunpack.c.l.b16 %v1682
    %v1818 = vunpack.c.l.b16 %v1683
    %v1819 = vunpack.c.l.b16 %v1684
    %v1820 = vunpack.c.l.b16 %v1685
    %v1821 = vunpack.c.l.b16 %v1686
    %v1822 = vunpack.c.l.b16 %v1687
    %v1823 = vunpack.c.l.b16 %v1688
    %v1824 = vunpack.c.l.b16 %v1689
    %v1825 = vunpack.c.l.b16 %v1690
    %v1826 = vunpack.c.l.b16 %v1691
    %v1827 = vunpack.c.l.b16 %v1692
    %v1828 = vunpack.c.l.b16 %v1693
    %v1829 = vunpack.c.l.b16 %v1694
    %v1830 = vunpack.c.l.b16 %v1695
    %v1831 = vunpack.c.l.b16 %v1696
    %v1832 = vunpack.c.l.b16 %v1697
    %v1833 = vunpack.c.l.b16 %v1698
    %v1834 = vunpack.c.l.b16 %v1699
    %v1835 = vunpack.c.l.b16 %v1700
    %v1836 = vunpack.c.l.b16 %v1701
    %v1837 = vunpack.c.l.b16 %v1702
    %v1838 = vunpack.c.l.b16 %v1703
    %v1839 = vunpack.c.l.b16 %v1704
    %v1840 = vunpack.c.l.b16 %v1705
    %v1841 = vunpack.c.l.b16 %v1706
    %v1842 = vunpack.c.l.b16 %v1707
    %v1843 = vunpack.c.l.b16 %v1708
    %v1844 = vunpack.c.l.b16 %v1709
    %v1845 = vunpack.c.l.b16 %v1710
    %v1846 = vunpack.c.l.b16 %v1711
    %v1847 = vunpack.c.l.b16 %v1712
    %v1848 = vunpack.c.l.b16 %v1713
    %v1849 = vunpack.c.l.b16 %v1714
    %v1850 = vunpack.c.l.b16 %v1715
    %v1851 = vunpack.c.l.b16 %v1716
    %v1852 = vunpack.c.l.b16 %v1717
    %v1853 = vunpack.c.l.b16 %v1718
    %v1854 = vunpack.c.l.b16 %v1719
    %v1855 = vunpack.c.l.b16 %v1720
    %v1856 = vunpack.c.l.b16 %v1721
    %v1857 = vunpack.c.l.b16 %v1722
    %v1858 = vunpack.c.l.b16 %v1723
    %v1859 = vunpack.c.l.b16 %v1724
    %v1860 = vunpack.c.l.b16 %v1725
    %v1861 = vunpack.c.l.b16 %v1726
    %v1862 = vpack.c.b16 %v1799, %v1798
    %v1863 = vpack.c.b16 %v1801, %v1800
    %v1864 = vpack.c.b16 %v1803, %v1802
    %v1865 = vpack.c.b16 %v1805, %v1804
    %v1866 = vpack.c.b16 %v1807, %v1806
    %v1867 = vpack.c.b16 %v1809, %v1808
    %v1868 = vpack.c.b16 %v1811, %v1810
    %v1869 = vpack.c.b16 %v1813, %v1812
    %v1870 = vpack.c.b16 %v1815, %v1814
    %v1871 = vpack.c.b16 %v1817, %v1816
    %v1872 = vpack.c.b16 %v1819, %v1818
    %v1873 = vpack.c.b16 %v1821, %v1820
    %v1874 = vpack.c.b16 %v1823, %v1822
    %v1875 = vpack.c.b16 %v1825, %v1824
    %v1876 = vpack.c.b16 %v1827, %v1826
    %v1877 = vpack.c.b16 %v1829, %v1828
    %v1878 = vpack.c.b16 %v1831, %v1830
    %v1879 = vpack.c.b16 %v1833, %v1832
    %v1880 = vpack.c.b16 %v1835, %v1834
    %v1881 = vpack.c.b16 %v1837, %v1836
    %v1882 = vpack.c.b16 %v1839, %v1838
    %v1883 = vpack.c.b16 %v1841, %v1840
    %v1884 = vpack.c.b16 %v1843, %v1842
    %v1885 = vpack.c.b16 %v1845, %v1844
    %v1886 = vpack.c.b16 %v1847, %v1846
    %v1887 = vpack.c.b16 %v1849, %v1848
    %v1888 = vpack.c.b16 %v1851, %v1850
    %v1889 = vpack.c.b16 %v1853, %v1852
    %v1890 = vpack.c.b16 %v1855, %v1854
    %v1891 = vpack.c.b16 %v1857, %v1856
    %v1892 = vpack.c.b16 %v1859, %v1858
    %v1893 = vpack.c.b16 %v1861, %v1860
    %1926 = vmatprep.subr.bf16.mxu0 0
    %1927 = vmatpush1.bf16.msra.mxu0 %v1869
    %1928 = vmatprep.subr.bf16.mxu0 0
    %1929 = vmatpush1.bf16.msra.mxu0 %v1868
    %1930 = vmatprep.subr.bf16.mxu0 0
    %1931 = vmatpush1.bf16.msra.mxu0 %v1867
    %1932 = vmatprep.subr.bf16.mxu0 0
    %1933 = vmatpush1.bf16.msra.mxu0 %v1866
    %1934 = vmatprep.subr.bf16.mxu0 0
    %1935 = vmatpush1.bf16.msra.mxu0 %v1865
    %1936 = vmatprep.subr.bf16.mxu0 0
    %1937 = vmatpush1.bf16.msra.mxu0 %v1864
    %1938 = vmatprep.subr.bf16.mxu0 0
    %1939 = vmatpush1.bf16.msra.mxu0 %v1863
    %1940 = vmatprep.subr.bf16.mxu0 0
    %1941 = vmatpush1.bf16.msra.mxu0 %v1862
    %1942 = vmatprep.subr.bf16.mxu0 0
    %1943 = vmatpush2.bf16.msra.mxu0 %v1877
    %1944 = vmatprep.subr.bf16.mxu0 0
    %1945 = vmatpush2.bf16.msra.mxu0 %v1876
    %1946 = vmatprep.subr.bf16.mxu0 0
    %1947 = vmatpush2.bf16.msra.mxu0 %v1875
    %1948 = vmatprep.subr.bf16.mxu0 0
    %1949 = vmatpush2.bf16.msra.mxu0 %v1874
    %1950 = vmatprep.subr.bf16.mxu0 0
    %1951 = vmatpush2.bf16.msra.mxu0 %v1873
    %1952 = vmatprep.subr.bf16.mxu0 0
    %1953 = vmatpush2.bf16.msra.mxu0 %v1872
    %1954 = vmatprep.subr.bf16.mxu0 0
    %1955 = vmatpush2.bf16.msra.mxu0 %v1871
    %1956 = vmatprep.subr.bf16.mxu0 0
    %1957 = vmatpush2.bf16.msra.mxu0 %v1870
    %1958 = vmatprep.mubr.bf16.mxu0 %v1660
    %1959 = vmatmul.mubr.bf16.gmra.mxu0 %v1659
    %v1960 = vpop.f32.mrf.mxu0
    %v1961 = vadd.f32 %v1732, %v1960
    %v1962 = vpop.f32.mrf.mxu0
    %v1963 = vpop.f32.mrf.mxu0
    %v1964 = vpop.f32.mrf.mxu0
    %1965 = vdwg.mxu0
    %1966 = vmatprep.subr.bf16.mxu0 0
    %1967 = vmatpush1.bf16.msra.mxu0 %v1885
    %1968 = vmatprep.subr.bf16.mxu0 0
    %1969 = vmatpush1.bf16.msra.mxu0 %v1884
    %1970 = vmatprep.subr.bf16.mxu0 0
    %1971 = vmatpush1.bf16.msra.mxu0 %v1883
    %1972 = vmatprep.subr.bf16.mxu0 0
    %1973 = vmatpush1.bf16.msra.mxu0 %v1882
    %1974 = vmatprep.subr.bf16.mxu0 0
    %1975 = vmatpush1.bf16.msra.mxu0 %v1881
    %1976 = vmatprep.subr.bf16.mxu0 0
    %1977 = vmatpush1.bf16.msra.mxu0 %v1880
    %1978 = vmatprep.subr.bf16.mxu0 0
    %1979 = vmatpush1.bf16.msra.mxu0 %v1879
    %1980 = vmatprep.subr.bf16.mxu0 0
    %1981 = vmatpush1.bf16.msra.mxu0 %v1878
    %1982 = vmatprep.subr.bf16.mxu0 0
    %1983 = vmatpush2.bf16.msra.mxu0 %v1893
    %1984 = vmatprep.subr.bf16.mxu0 0
    %1985 = vmatpush2.bf16.msra.mxu0 %v1892
    %1986 = vmatprep.subr.bf16.mxu0 0
    %1987 = vmatpush2.bf16.msra.mxu0 %v1891
    %1988 = vmatprep.subr.bf16.mxu0 0
    %1989 = vmatpush2.bf16.msra.mxu0 %v1890
    %1990 = vmatprep.subr.bf16.mxu0 0
    %1991 = vmatpush2.bf16.msra.mxu0 %v1889
    %1992 = vmatprep.subr.bf16.mxu0 0
    %1993 = vmatpush2.bf16.msra.mxu0 %v1888
    %1994 = vmatprep.subr.bf16.mxu0 0
    %1995 = vmatpush2.bf16.msra.mxu0 %v1887
    %1996 = vmatprep.subr.bf16.mxu0 0
    %1997 = vmatpush2.bf16.msra.mxu0 %v1886
    %1998 = vmatprep.mubr.bf16.mxu0 %v1662
    %1999 = vmatmul.mubr.bf16.gmra.mxu0 %v1661
    %v2000 = vpop.f32.mrf.mxu0
    %v2001 = vadd.f32 %v1961, %v2000
    %v2002 = vpop.f32.mrf.mxu0
    %v2003 = vpop.f32.mrf.mxu0
    %v2004 = vpop.f32.mrf.mxu0
    %2005 = vdwg.mxu0
    %v2006 = vpack.c.bf16 %v2001, %v2001
    %2007 = vst [vmem:[#allocation10] sm:$0xf] %v2006
    // Predicated region
    $region38: #{tpu_custom_call.1} parent=1 // pred_check
      _
    $region39: #{tpu_custom_call.1} parent=1 // pred_check_branch
      %2009 = sbr.rel (0) target = $region41
    $region40: #{tpu_custom_call.1} parent=1 // pred_region
      %s2011 = ssub.s32 64, 64
      %2012 = vsyncadd [#allocation4], %s2011
      %s2014 = sshll.u32 [#allocation10], 4
      %s2015 = int_to_ptr.vmem [resolvable:$true] %s2014
      %2017 = dma.vmem_to_hbm [thread:$0]  %s2015, 64, %s5, [#allocation4]
    $region41: #{tpu_custom_call.1} parent=1 // pred_fallthru
      _
    // Predicated region
    $region42: #{tpu_custom_call.1} parent=1 // pred_check
      _
    $region43: #{tpu_custom_call.1} parent=1 // pred_check_branch
      %2019 = sbr.rel (0) target = $region45
    $region44: #{tpu_custom_call.1} parent=1 // pred_region
      %2020 = dma.done [#allocation4], 64
    $region45: #{tpu_custom_call.1} parent=1 // pred_fallthru
      _
    %2021 = vsyncpa [#allocation3], 1
    %2022 = vsyncpa [#allocation6], 1
    %2023 = vsyncpa [#allocation9], 1
    %2024 = vsyncpa [#allocation4], 1

</llo_original>
